<compile_context>
chip_gen: v5e
topology: v5e:2x2
jax: 0.10.0
libtpu: 0.0.40
codegen_flags: <defaults>
</compile_context>

<pallas_src>
import functools

import jax
import jax.numpy as jnp
import numpy as np
from jax import lax
from jax.experimental import pallas as pl
from jax.experimental.pallas import tpu as pltpu

CP = 128            # padded output-channel width (lane-dense conv outputs)
_HEAD_TK = 512      # head contraction tile (K) target


def _round_up(x, m):
    return (x + m - 1) // m * m


def _cdiv(a, b):
    return (a + b - 1) // b


def _pick_vmem_limit_and_tm():
    """Generation-aware scoped-VMEM budget + conv M-tile cap."""
    try:
        cap = pltpu.get_tpu_info().vmem_capacity_bytes
    except Exception:
        return 32 * 1024 * 1024, 1024
    if cap >= 100 * 1024 * 1024:          # v5e / v6e: 128 MiB physical VMEM
        return 96 * 1024 * 1024, 2048
    return 32 * 1024 * 1024, 1024         # v7x: 64 MiB physical VMEM


_VMEM_LIMIT, _TM_CAP = _pick_vmem_limit_and_tm()


# ----------------------------------------------------------------------------
# Pallas kernels
# ----------------------------------------------------------------------------
def _conv_mm_kernel(x_ref, w_ref, b_ref, o_ref, *, normalize):
    """One M-tile of (patches @ weights) + bias + ReLU.

    conv1 (normalize=True) receives raw uint8 patches and does the
    (x - 127.5)/127.5 normalization in f32 before the bf16 MXU matmul.
    """
    if normalize:
        xf = x_ref[...].astype(jnp.int32).astype(jnp.float32)
        x = (xf * (1.0 / 127.5) - 1.0).astype(jnp.bfloat16)
    else:
        x = x_ref[...]
    y = jnp.dot(x, w_ref[...], preferred_element_type=jnp.float32) + b_ref[...]
    o_ref[...] = jnp.maximum(y, 0.0).astype(o_ref.dtype)


def _head_kernel(x_ref, w1_ref, b1_ref, w2_ref, b2_ref, o_ref, acc_ref, *,
                 num_actions):
    """Fused dueling head, K-tiled over the flattened features.

    acc accumulates x @ [wa1|wv1] in f32; at the last K step we apply bias +
    ReLU, run the block-diagonal [wa2|wv2] matmul and the dueling combine
    (scalar mean over the WHOLE advantage tensor, exactly as the module).
    Output block is lane-dense (B, 128); real Q-values live in cols [:na].
    """
    k = pl.program_id(0)

    @pl.when(k == 0)
    def _():
        acc_ref[...] = jnp.zeros_like(acc_ref)

    acc_ref[...] += jnp.dot(x_ref[...], w1_ref[...],
                            preferred_element_type=jnp.float32)

    @pl.when(k == pl.num_programs(0) - 1)
    def _():
        h = jnp.maximum(acc_ref[...] + b1_ref[...], 0.0).astype(jnp.bfloat16)
        y = jnp.dot(h, w2_ref[...], preferred_element_type=jnp.float32) + b2_ref[...]
        adv = y[:, :num_actions]
        val = y[:, num_actions:num_actions + 1]
        # cols < num_actions hold val + adv - mean(adv); the rest is garbage
        # that gets sliced off outside the kernel (keeps the store lane-dense).
        o_ref[...] = val + y - jnp.mean(adv)


# ----------------------------------------------------------------------------
# pallas_call wrappers
# ----------------------------------------------------------------------------
def conv_mm(patches, w_mat, bias, *, normalize):
    """(M, K) patches @ (K, 128) weights + bias + ReLU, tiled over M."""
    M, K = patches.shape
    N = w_mat.shape[1]
    # >=2 programs when possible (v7x megacore); rows multiple of 32 (u8 tile).
    TM = max(32, min(_TM_CAP, _round_up(max(_cdiv(M, 2), 1), 32)))
    Mp = _round_up(M, TM)
    if Mp != M:
        patches = jnp.pad(patches, ((0, Mp - M), (0, 0)))
    out = pl.pallas_call(
        functools.partial(_conv_mm_kernel, normalize=normalize),
        out_shape=jax.ShapeDtypeStruct((Mp, N), jnp.bfloat16),
        grid=(Mp // TM,),
        in_specs=[
            pl.BlockSpec((TM, K), lambda i: (i, 0)),   # patch tile (pipelined)
            pl.BlockSpec((K, N), lambda i: (0, 0)),    # weights: constant index
            pl.BlockSpec((1, N), lambda i: (0, 0)),    # bias:    constant index
        ],
        out_specs=pl.BlockSpec((TM, N), lambda i: (i, 0)),
        compiler_params=pltpu.CompilerParams(
            dimension_semantics=("parallel",),
            vmem_limit_bytes=_VMEM_LIMIT),
    )(patches, w_mat, bias)
    return out[:M] if Mp != M else out


def dueling_head(x_flat, w1, b1, w2, b2, num_actions):
    """K-tiled fused dueling head; returns (B, 128) padded Q block."""
    B, F_pad = x_flat.shape
    H2 = w1.shape[1]
    NP = w2.shape[1]
    TK = F_pad if F_pad <= _HEAD_TK else _HEAD_TK
    n_k = F_pad // TK
    return pl.pallas_call(
        functools.partial(_head_kernel, num_actions=num_actions),
        out_shape=jax.ShapeDtypeStruct((B, NP), jnp.float32),
        grid=(n_k,),
        in_specs=[
            pl.BlockSpec((B, TK), lambda k: (0, k)),    # activation K-chunk
            pl.BlockSpec((TK, H2), lambda k: (k, 0)),   # fc1 weight K-chunk
            pl.BlockSpec((1, H2), lambda k: (0, 0)),    # fc1 bias (constant)
            pl.BlockSpec((H2, NP), lambda k: (0, 0)),   # fc2 weight (constant)
            pl.BlockSpec((1, NP), lambda k: (0, 0)),    # fc2 bias (constant)
        ],
        out_specs=pl.BlockSpec((B, NP), lambda k: (0, 0)),
        scratch_shapes=[pltpu.VMEM((B, H2), jnp.float32)],
        compiler_params=pltpu.CompilerParams(
            dimension_semantics=("arbitrary",),
            vmem_limit_bytes=_VMEM_LIMIT),
    )(x_flat, w1, b1, w2, b2)


# ----------------------------------------------------------------------------
# im2col (layout plumbing in XLA, outside the kernels)
# ----------------------------------------------------------------------------
def im2col_nhwc(x, kh, kw, stride):
    """x: (B,H,W,C) -> patches (B*oh*ow, kh*kw*C) in (kh, kw, cin) order."""
    B, H, W, C = x.shape
    oh = (H - kh) // stride + 1
    ow = (W - kw) // stride + 1
    cols = []
    for i in range(kh):
        for j in range(kw):
            cols.append(x[:, i:i + stride * (oh - 1) + 1:stride,
                          j:j + stride * (ow - 1) + 1:stride, :])
    p = jnp.stack(cols, axis=3)  # (B, oh, ow, kh*kw, C)
    return p.reshape(B * oh * ow, kh * kw * C), (B, oh, ow)


# ----------------------------------------------------------------------------
# One-time parameter repacking (runs eagerly, OUTSIDE the jitted forward)
# ----------------------------------------------------------------------------
def prepare_params(params, *, in_hw, conv_fmaps, fc_fmaps, num_actions):
    H, W = in_hw
    c2 = 2 * conv_fmaps
    oh1, ow1 = (H - 8) // 4 + 1, (W - 8) // 4 + 1
    oh2, ow2 = (oh1 - 4) // 2 + 1, (ow1 - 4) // 2 + 1
    oh3, ow3 = oh2 - 2, ow2 - 2

    def pack_conv(w_hwio, b):
        kh, kw, cin, cout = w_hwio.shape
        K = kh * kw * cin                              # no K zero-padding
        w = jnp.zeros((K, CP), jnp.float32).at[:, :cout].set(
            w_hwio.reshape(K, cout))                   # N padded to 128
        bp = jnp.zeros((1, CP), jnp.float32).at[0, :cout].set(b)
        return w.astype(jnp.bfloat16), bp

    w1m, b1p = pack_conv(params["w1"], params["b1"])
    w2m, b2p = pack_conv(params["w2"], params["b2"])
    w3m, b3p = pack_conv(params["w3"], params["b3"])

    # Head fc1: rows were in torch NCHW-flatten order (c*oh*ow + h*ow + w);
    # permute once to our NHWC-flatten order ((h*ow + w)*c2 + c).
    F = oh3 * ow3 * c2

    def perm_fc1(w):
        w4 = w.reshape(c2, oh3, ow3, fc_fmaps)
        return jnp.transpose(w4, (1, 2, 0, 3)).reshape(F, fc_fmaps)

    w1h = jnp.concatenate([perm_fc1(params["wa1"]),
                           perm_fc1(params["wv1"])], axis=1)    # (F, 2*fc)
    TK = F if F <= _HEAD_TK else _HEAD_TK
    F_pad = _round_up(F, TK)
    if F_pad != F:
        w1h = jnp.pad(w1h, ((0, F_pad - F), (0, 0)))
    b1h = jnp.concatenate([params["ba1"], params["bv1"]]).reshape(1, 2 * fc_fmaps)

    n_pad = _round_up(num_actions + 1, 128)
    w2h = jnp.zeros((2 * fc_fmaps, n_pad), jnp.float32)
    w2h = w2h.at[:fc_fmaps, :num_actions].set(params["wa2"])    # advantage blk
    w2h = w2h.at[fc_fmaps:, num_actions].set(params["wv2"][:, 0])  # value col
    b2h = jnp.zeros((1, n_pad), jnp.float32)
    b2h = b2h.at[0, :num_actions].set(params["ba2"]).at[0, num_actions].set(
        params["bv2"][0])

    return dict(w1m=w1m, b1p=b1p, w2m=w2m, b2p=b2p, w3m=w3m, b3p=b3p,
                w1h=w1h.astype(jnp.bfloat16), b1h=b1h,
                w2h=w2h.astype(jnp.bfloat16), b2h=b2h)


# ----------------------------------------------------------------------------
# Full DuelingDQN forward (jitted; takes pre-packed params)
# ----------------------------------------------------------------------------
def dueling_dqn_forward(x_nchw, packed, *, num_actions, conv_fmaps):
    c1, c2 = conv_fmaps, 2 * conv_fmaps
    x = jnp.transpose(x_nchw, (0, 2, 3, 1))             # NHWC, still uint8

    # conv1 (8x8, stride 4): uint8 patches, normalization fused in-kernel
    p1, (B, oh1, ow1) = im2col_nhwc(x, 8, 8, 4)
    y1 = conv_mm(p1, packed["w1m"], packed["b1p"],
                 normalize=True).reshape(B, oh1, ow1, CP)

    # conv2 (4x4, stride 2): contract over the REAL 32 input channels only
    p2, (_, oh2, ow2) = im2col_nhwc(y1[..., :c1], 4, 4, 2)
    y2 = conv_mm(p2, packed["w2m"], packed["b2p"],
                 normalize=False).reshape(B, oh2, ow2, CP)

    # conv3 (3x3, stride 1): contract over the REAL 64 input channels only
    p3, (_, oh3, ow3) = im2col_nhwc(y2[..., :c2], 3, 3, 1)
    y3 = conv_mm(p3, packed["w3m"], packed["b3p"],
                 normalize=False).reshape(B, oh3, ow3, CP)

    # NHWC flatten over real channels (head fc1 weights were permuted to match)
    x_flat = y3[..., :c2].reshape(B, oh3 * ow3 * c2)
    F = x_flat.shape[1]
    F_pad = packed["w1h"].shape[0]
    if F_pad != F:
        x_flat = jnp.pad(x_flat, ((0, 0), (0, F_pad - F)))

    q_pad = dueling_head(x_flat, packed["w1h"], packed["b1h"],
                         packed["w2h"], packed["b2h"], num_actions)
    return q_pad[:, :num_actions]


# ----------------------------------------------------------------------------
# Pure-JAX reference (module semantics, f32 HIGHEST) for correctness check
# ----------------------------------------------------------------------------
def reference_forward(x_nchw, params):
    x = (x_nchw.astype(jnp.float32) - 127.5) / 127.5
    dn = ("NCHW", "HWIO", "NCHW")
    hp = jax.lax.Precision.HIGHEST

    def conv(x, w, b, s):
        y = lax.conv_general_dilated(x, w, (s, s), "VALID",
                                     dimension_numbers=dn, precision=hp)
        return jnp.maximum(y + b.reshape(1, -1, 1, 1), 0.0)

    x = conv(x, params["w1"], params["b1"], 4)
    x = conv(x, params["w2"], params["b2"], 2)
    x = conv(x, params["w3"], params["b3"], 1)
    x = x.reshape(x.shape[0], -1)
    ha = jnp.maximum(jnp.dot(x, params["wa1"], precision=hp) + params["ba1"], 0.0)
    adv = jnp.dot(ha, params["wa2"], precision=hp) + params["ba2"]
    hv = jnp.maximum(jnp.dot(x, params["wv1"], precision=hp) + params["bv1"], 0.0)
    val = jnp.dot(hv, params["wv2"], precision=hp) + params["bv2"]
    return val + adv - adv.mean()


# ----------------------------------------------------------------------------
# Deterministic parameter init (PyTorch-like uniform(-1/sqrt(fan_in), +))
# ----------------------------------------------------------------------------
def init_params(key, in_ch, conv_fmaps, fc_fmaps, num_actions, flat_conv_outputs):
    def uni(k, shape, fan_in):
        b = 1.0 / np.sqrt(fan_in)
        return jax.random.uniform(k, shape, jnp.float32, -b, b)

    ks = jax.random.split(key, 14)
    c1, c2 = conv_fmaps, 2 * conv_fmaps
    p = {}
    p["w1"] = uni(ks[0], (8, 8, in_ch, c1), in_ch * 8 * 8)   # HWIO
    p["b1"] = uni(ks[1], (c1,), in_ch * 8 * 8)
    p["w2"] = uni(ks[2], (4, 4, c1, c2), c1 * 4 * 4)
    p["b2"] = uni(ks[3], (c2,), c1 * 4 * 4)
    p["w3"] = uni(ks[4], (3, 3, c2, c2), c2 * 3 * 3)
    p["b3"] = uni(ks[5], (c2,), c2 * 3 * 3)
    F = flat_conv_outputs
    p["wa1"] = uni(ks[6], (F, fc_fmaps), F)
    p["ba1"] = uni(ks[7], (fc_fmaps,), F)
    p["wa2"] = uni(ks[8], (fc_fmaps, num_actions), fc_fmaps)
    p["ba2"] = uni(ks[9], (num_actions,), fc_fmaps)
    p["wv1"] = uni(ks[10], (F, fc_fmaps), F)
    p["bv1"] = uni(ks[11], (fc_fmaps,), F)
    p["wv2"] = uni(ks[12], (fc_fmaps, 1), fc_fmaps)
    p["bv2"] = uni(ks[13], (1,), fc_fmaps)
    return p


if __name__ == "__main__":
    # Smallest valid shapes for this conv stack: spatial 36 -> 8 -> 3 -> 1,
    # so flat_conv_outputs = 64 * 1 * 1 = 64.
    B, C, H, W = 2, 4, 36, 36
    conv_fmaps, fc_fmaps, num_actions = 32, 512, 6
    flat_conv_outputs = 2 * conv_fmaps * 1 * 1

    key = jax.random.PRNGKey(0)
    k_x, k_p = jax.random.split(key)
    # raw uint8 frames, like Atari observations
    x = jax.random.randint(k_x, (B, C, H, W), 0, 256, dtype=jnp.int32).astype(jnp.uint8)
    params = init_params(k_p, C, conv_fmaps, fc_fmaps, num_actions, flat_conv_outputs)

    # One-time weight repacking (outside the jitted per-call forward).
    packed = prepare_params(params, in_hw=(H, W), conv_fmaps=conv_fmaps,
                            fc_fmaps=fc_fmaps, num_actions=num_actions)

    fwd = jax.jit(functools.partial(dueling_dqn_forward,
                                    num_actions=num_actions,
                                    conv_fmaps=conv_fmaps))
    q = jax.block_until_ready(fwd(x, packed))
    assert q.shape == (B, num_actions), q.shape

    q_ref = jax.block_until_ready(reference_forward(x, params))
    # bf16 MXU operands vs f32 HIGHEST-precision reference -> loosened tolerance.
    assert jnp.allclose(q, q_ref, rtol=2e-2, atol=2e-2), (q, q_ref)

    print("KERNEL_OK")
</pallas_src>

<mosaic_0001>
module attributes {stable_mosaic.version = 11 : i64} {
  func.func @_conv_mm_kernel(%arg0: i32, %arg1: memref<64x256xi8, #tpu.memory_space<vmem>>, %arg2: memref<256x128xbf16, #tpu.memory_space<vmem>>, %arg3: memref<1x128xf32, #tpu.memory_space<vmem>>, %arg4: memref<64x128xbf16, #tpu.memory_space<vmem>>) attributes {dimension_semantics = [#tpu.dimension_semantics<parallel>], iteration_bounds = array<i64: 2>, scalar_prefetch = 0 : i64, scratch_operands = 0 : i64, tpu.core_type = #tpu.core_type<tc>, window_params = [{transform_indices = @transform_0, window_bounds = array<i64: 64, 256>}, {pipeline_mode = #tpu.pipeline_mode<synchronous>, transform_indices = @transform_1, window_bounds = array<i64: 256, 128>}, {pipeline_mode = #tpu.pipeline_mode<synchronous>, transform_indices = @transform_2, window_bounds = array<i64: 1, 128>}, {transform_indices = @transform_3, window_bounds = array<i64: 64, 128>}]} {
    %c0 = arith.constant 0 : index
    %c0_0 = arith.constant 0 : index
    %0 = vector.load %arg1[%c0, %c0_0] : memref<64x256xi8, #tpu.memory_space<vmem>>, vector<64x256xi8>
    %1 = arith.extui %0 : vector<64x256xi8> to vector<64x256xi32>
    %2 = arith.sitofp %1 : vector<64x256xi32> to vector<64x256xf32>
    %cst = arith.constant 0.00784313772 : f32
    %3 = vector.broadcast %cst : f32 to vector<64x256xf32>
    %4 = arith.mulf %2, %3 : vector<64x256xf32>
    %cst_1 = arith.constant 1.000000e+00 : f32
    %5 = vector.broadcast %cst_1 : f32 to vector<64x256xf32>
    %6 = arith.subf %4, %5 : vector<64x256xf32>
    %7 = arith.truncf %6 : vector<64x256xf32> to vector<64x256xbf16>
    %c0_2 = arith.constant 0 : index
    %c0_3 = arith.constant 0 : index
    %8 = vector.load %arg2[%c0_2, %c0_3] : memref<256x128xbf16, #tpu.memory_space<vmem>>, vector<256x128xbf16>
    %cst_4 = arith.constant dense<0.000000e+00> : vector<64x128xf32>
    %9 = tpu.matmul %7, %8, %cst_4 {dimension_numbers = #tpu.dot_dimension_numbers<[1], [0], [0], [1], [0, 0, 1, 1], [], []>} : vector<64x256xbf16>, vector<256x128xbf16>, vector<64x128xf32> -> vector<64x128xf32>
    %c0_5 = arith.constant 0 : index
    %c0_6 = arith.constant 0 : index
    %10 = vector.load %arg3[%c0_5, %c0_6] : memref<1x128xf32, #tpu.memory_space<vmem>>, vector<1x128xf32>
    %11 = vector.broadcast %10 : vector<1x128xf32> to vector<64x128xf32>
    %12 = arith.addf %9, %11 : vector<64x128xf32>
    %cst_7 = arith.constant 0.000000e+00 : f32
    %13 = vector.broadcast %cst_7 : f32 to vector<64x128xf32>
    %14 = arith.maximumf %12, %13 : vector<64x128xf32>
    %15 = arith.truncf %14 : vector<64x128xf32> to vector<64x128xbf16>
    %c0_8 = arith.constant 0 : index
    %c0_9 = arith.constant 0 : index
    %16 = vector.load %arg4[%c0_8, %c0_9] : memref<64x128xbf16, #tpu.memory_space<vmem>>, vector<64x128xbf16>
    tpu.vector_store %arg4[%c0_8, %c0_9], %15 {strides = array<i32>} : memref<64x128xbf16, #tpu.memory_space<vmem>>, vector<64x128xbf16>,
    return
  }
  func.func @transform_0(%arg0: i32) -> (i32, i32) {
    %c0_i32 = arith.constant 0 : i32
    %c0_i32_0 = arith.constant 0 : i32
    return %arg0, %c0_i32 : i32, i32
  }
  func.func @transform_1(%arg0: i32) -> (i32, i32) {
    %c0_i32 = arith.constant 0 : i32
    %c0_i32_0 = arith.constant 0 : i32
    %c0_i32_1 = arith.constant 0 : i32
    return %c0_i32, %c0_i32_0 : i32, i32
  }
  func.func @transform_2(%arg0: i32) -> (i32, i32) {
    %c0_i32 = arith.constant 0 : i32
    %c0_i32_0 = arith.constant 0 : i32
    %c0_i32_1 = arith.constant 0 : i32
    return %c0_i32, %c0_i32_0 : i32, i32
  }
  func.func @transform_3(%arg0: i32) -> (i32, i32) {
    %c0_i32 = arith.constant 0 : i32
    %c0_i32_0 = arith.constant 0 : i32
    return %arg0, %c0_i32 : i32, i32
  }
}

module attributes {stable_mosaic.version = 11 : i64} {
  func.func @_conv_mm_kernel(%arg0: i32, %arg1: memref<32x512xbf16, #tpu.memory_space<vmem>>, %arg2: memref<512x128xbf16, #tpu.memory_space<vmem>>, %arg3: memref<1x128xf32, #tpu.memory_space<vmem>>, %arg4: memref<32x128xbf16, #tpu.memory_space<vmem>>) attributes {dimension_semantics = [#tpu.dimension_semantics<parallel>], iteration_bounds = array<i64: 1>, scalar_prefetch = 0 : i64, scratch_operands = 0 : i64, tpu.core_type = #tpu.core_type<tc>, window_params = [{transform_indices = @transform_0, window_bounds = array<i64: 32, 512>}, {pipeline_mode = #tpu.pipeline_mode<synchronous>, transform_indices = @transform_1, window_bounds = array<i64: 512, 128>}, {pipeline_mode = #tpu.pipeline_mode<synchronous>, transform_indices = @transform_2, window_bounds = array<i64: 1, 128>}, {transform_indices = @transform_3, window_bounds = array<i64: 32, 128>}]} {
    %c0 = arith.constant 0 : index
    %c0_0 = arith.constant 0 : index
    %0 = vector.load %arg1[%c0, %c0_0] : memref<32x512xbf16, #tpu.memory_space<vmem>>, vector<32x512xbf16>
    %c0_1 = arith.constant 0 : index
    %c0_2 = arith.constant 0 : index
    %1 = vector.load %arg2[%c0_1, %c0_2] : memref<512x128xbf16, #tpu.memory_space<vmem>>, vector<512x128xbf16>
    %cst = arith.constant dense<0.000000e+00> : vector<32x128xf32>
    %2 = tpu.matmul %0, %1, %cst {dimension_numbers = #tpu.dot_dimension_numbers<[1], [0], [0], [1], [0, 0, 1, 1], [], []>} : vector<32x512xbf16>, vector<512x128xbf16>, vector<32x128xf32> -> vector<32x128xf32>
    %c0_3 = arith.constant 0 : index
    %c0_4 = arith.constant 0 : index
    %3 = vector.load %arg3[%c0_3, %c0_4] : memref<1x128xf32, #tpu.memory_space<vmem>>, vector<1x128xf32>
    %4 = vector.broadcast %3 : vector<1x128xf32> to vector<32x128xf32>
    %5 = arith.addf %2, %4 : vector<32x128xf32>
    %cst_5 = arith.constant 0.000000e+00 : f32
    %6 = vector.broadcast %cst_5 : f32 to vector<32x128xf32>
    %7 = arith.maximumf %5, %6 : vector<32x128xf32>
    %8 = arith.truncf %7 : vector<32x128xf32> to vector<32x128xbf16>
    %c0_6 = arith.constant 0 : index
    %c0_7 = arith.constant 0 : index
    %9 = vector.load %arg4[%c0_6, %c0_7] : memref<32x128xbf16, #tpu.memory_space<vmem>>, vector<32x128xbf16>
    tpu.vector_store %arg4[%c0_6, %c0_7], %8 {strides = array<i32>} : memref<32x128xbf16, #tpu.memory_space<vmem>>, vector<32x128xbf16>,
    return
  }
  func.func @transform_0(%arg0: i32) -> (i32, i32) {
    %c0_i32 = arith.constant 0 : i32
    %c0_i32_0 = arith.constant 0 : i32
    return %arg0, %c0_i32 : i32, i32
  }
  func.func @transform_1(%arg0: i32) -> (i32, i32) {
    %c0_i32 = arith.constant 0 : i32
    %c0_i32_0 = arith.constant 0 : i32
    %c0_i32_1 = arith.constant 0 : i32
    return %c0_i32, %c0_i32_0 : i32, i32
  }
  func.func @transform_2(%arg0: i32) -> (i32, i32) {
    %c0_i32 = arith.constant 0 : i32
    %c0_i32_0 = arith.constant 0 : i32
    %c0_i32_1 = arith.constant 0 : i32
    return %c0_i32, %c0_i32_0 : i32, i32
  }
  func.func @transform_3(%arg0: i32) -> (i32, i32) {
    %c0_i32 = arith.constant 0 : i32
    %c0_i32_0 = arith.constant 0 : i32
    return %arg0, %c0_i32 : i32, i32
  }
}

module attributes {stable_mosaic.version = 11 : i64} {
  func.func @_conv_mm_kernel(%arg0: i32, %arg1: memref<32x576xbf16, #tpu.memory_space<vmem>>, %arg2: memref<576x128xbf16, #tpu.memory_space<vmem>>, %arg3: memref<1x128xf32, #tpu.memory_space<vmem>>, %arg4: memref<32x128xbf16, #tpu.memory_space<vmem>>) attributes {dimension_semantics = [#tpu.dimension_semantics<parallel>], iteration_bounds = array<i64: 1>, scalar_prefetch = 0 : i64, scratch_operands = 0 : i64, tpu.core_type = #tpu.core_type<tc>, window_params = [{transform_indices = @transform_0, window_bounds = array<i64: 32, 576>}, {pipeline_mode = #tpu.pipeline_mode<synchronous>, transform_indices = @transform_1, window_bounds = array<i64: 576, 128>}, {pipeline_mode = #tpu.pipeline_mode<synchronous>, transform_indices = @transform_2, window_bounds = array<i64: 1, 128>}, {transform_indices = @transform_3, window_bounds = array<i64: 32, 128>}]} {
    %c0 = arith.constant 0 : index
    %c0_0 = arith.constant 0 : index
    %0 = vector.load %arg1[%c0, %c0_0] : memref<32x576xbf16, #tpu.memory_space<vmem>>, vector<32x576xbf16>
    %c0_1 = arith.constant 0 : index
    %c0_2 = arith.constant 0 : index
    %1 = vector.load %arg2[%c0_1, %c0_2] : memref<576x128xbf16, #tpu.memory_space<vmem>>, vector<576x128xbf16>
    %cst = arith.constant dense<0.000000e+00> : vector<32x128xf32>
    %2 = tpu.matmul %0, %1, %cst {dimension_numbers = #tpu.dot_dimension_numbers<[1], [0], [0], [1], [0, 0, 1, 1], [], []>} : vector<32x576xbf16>, vector<576x128xbf16>, vector<32x128xf32> -> vector<32x128xf32>
    %c0_3 = arith.constant 0 : index
    %c0_4 = arith.constant 0 : index
    %3 = vector.load %arg3[%c0_3, %c0_4] : memref<1x128xf32, #tpu.memory_space<vmem>>, vector<1x128xf32>
    %4 = vector.broadcast %3 : vector<1x128xf32> to vector<32x128xf32>
    %5 = arith.addf %2, %4 : vector<32x128xf32>
    %cst_5 = arith.constant 0.000000e+00 : f32
    %6 = vector.broadcast %cst_5 : f32 to vector<32x128xf32>
    %7 = arith.maximumf %5, %6 : vector<32x128xf32>
    %8 = arith.truncf %7 : vector<32x128xf32> to vector<32x128xbf16>
    %c0_6 = arith.constant 0 : index
    %c0_7 = arith.constant 0 : index
    %9 = vector.load %arg4[%c0_6, %c0_7] : memref<32x128xbf16, #tpu.memory_space<vmem>>, vector<32x128xbf16>
    tpu.vector_store %arg4[%c0_6, %c0_7], %8 {strides = array<i32>} : memref<32x128xbf16, #tpu.memory_space<vmem>>, vector<32x128xbf16>,
    return
  }
  func.func @transform_0(%arg0: i32) -> (i32, i32) {
    %c0_i32 = arith.constant 0 : i32
    %c0_i32_0 = arith.constant 0 : i32
    return %arg0, %c0_i32 : i32, i32
  }
  func.func @transform_1(%arg0: i32) -> (i32, i32) {
    %c0_i32 = arith.constant 0 : i32
    %c0_i32_0 = arith.constant 0 : i32
    %c0_i32_1 = arith.constant 0 : i32
    return %c0_i32, %c0_i32_0 : i32, i32
  }
  func.func @transform_2(%arg0: i32) -> (i32, i32) {
    %c0_i32 = arith.constant 0 : i32
    %c0_i32_0 = arith.constant 0 : i32
    %c0_i32_1 = arith.constant 0 : i32
    return %c0_i32, %c0_i32_0 : i32, i32
  }
  func.func @transform_3(%arg0: i32) -> (i32, i32) {
    %c0_i32 = arith.constant 0 : i32
    %c0_i32_0 = arith.constant 0 : i32
    return %arg0, %c0_i32 : i32, i32
  }
}

module attributes {stable_mosaic.version = 11 : i64} {
  func.func @_head_kernel(%arg0: i32, %arg1: memref<2x64xbf16, #tpu.memory_space<vmem>>, %arg2: memref<64x1024xbf16, #tpu.memory_space<vmem>>, %arg3: memref<1x1024xf32, #tpu.memory_space<vmem>>, %arg4: memref<1024x128xbf16, #tpu.memory_space<vmem>>, %arg5: memref<1x128xf32, #tpu.memory_space<vmem>>, %arg6: memref<2x128xf32, #tpu.memory_space<vmem>>, %arg7: memref<2x1024xf32, #tpu.memory_space<vmem>>) attributes {dimension_semantics = [#tpu.dimension_semantics<arbitrary>], iteration_bounds = array<i64: 1>, scalar_prefetch = 0 : i64, scratch_operands = 1 : i64, tpu.core_type = #tpu.core_type<tc>, window_params = [{transform_indices = @transform_0, window_bounds = array<i64: 2, 64>}, {transform_indices = @transform_1, window_bounds = array<i64: 64, 1024>}, {pipeline_mode = #tpu.pipeline_mode<synchronous>, transform_indices = @transform_2, window_bounds = array<i64: 1, 1024>}, {pipeline_mode = #tpu.pipeline_mode<synchronous>, transform_indices = @transform_3, window_bounds = array<i64: 1024, 128>}, {pipeline_mode = #tpu.pipeline_mode<synchronous>, transform_indices = @transform_4, window_bounds = array<i64: 1, 128>}, {pipeline_mode = #tpu.pipeline_mode<synchronous>, transform_indices = @transform_5, window_bounds = array<i64: 2, 128>}]} {
    %c0_i32 = arith.constant 0 : i32
    %0 = arith.cmpi eq, %arg0, %c0_i32 : i32
    %1 = arith.extui %0 : i1 to i32
    %c0_i32_0 = arith.constant 0 : i32
    %2 = arith.cmpi ne, %1, %c0_i32_0 : i32
    scf.if %2 {
      %cst_10 = arith.constant 0.000000e+00 : f32
      %12 = vector.broadcast %cst_10 : f32 to vector<2x1024xf32>
      %c0_11 = arith.constant 0 : index
      %c0_12 = arith.constant 0 : index
      %13 = vector.load %arg7[%c0_11, %c0_12] : memref<2x1024xf32, #tpu.memory_space<vmem>>, vector<2x1024xf32>
      tpu.vector_store %arg7[%c0_11, %c0_12], %12 {strides = array<i32>} : memref<2x1024xf32, #tpu.memory_space<vmem>>, vector<2x1024xf32>,
    } else {
    }
    %c0 = arith.constant 0 : index
    %c0_1 = arith.constant 0 : index
    %3 = vector.load %arg7[%c0, %c0_1] : memref<2x1024xf32, #tpu.memory_space<vmem>>, vector<2x1024xf32>
    %c0_2 = arith.constant 0 : index
    %c0_3 = arith.constant 0 : index
    %4 = vector.load %arg1[%c0_2, %c0_3] : memref<2x64xbf16, #tpu.memory_space<vmem>>, vector<2x64xbf16>
    %c0_4 = arith.constant 0 : index
    %c0_5 = arith.constant 0 : index
    %5 = vector.load %arg2[%c0_4, %c0_5] : memref<64x1024xbf16, #tpu.memory_space<vmem>>, vector<64x1024xbf16>
    %cst = arith.constant dense<0.000000e+00> : vector<2x1024xf32>
    %6 = tpu.matmul %4, %5, %cst {dimension_numbers = #tpu.dot_dimension_numbers<[1], [0], [0], [1], [0, 0, 1, 1], [], []>} : vector<2x64xbf16>, vector<64x1024xbf16>, vector<2x1024xf32> -> vector<2x1024xf32>
    %7 = arith.addf %3, %6 : vector<2x1024xf32>
    %c0_6 = arith.constant 0 : index
    %c0_7 = arith.constant 0 : index
    %8 = vector.load %arg7[%c0_6, %c0_7] : memref<2x1024xf32, #tpu.memory_space<vmem>>, vector<2x1024xf32>
    tpu.vector_store %arg7[%c0_6, %c0_7], %7 {strides = array<i32>} : memref<2x1024xf32, #tpu.memory_space<vmem>>, vector<2x1024xf32>,
    %c0_i32_8 = arith.constant 0 : i32
    %9 = arith.cmpi eq, %arg0, %c0_i32_8 : i32
    %10 = arith.extui %9 : i1 to i32
    %c0_i32_9 = arith.constant 0 : i32
    %11 = arith.cmpi ne, %10, %c0_i32_9 : i32
    scf.if %11 {
      %c0_10 = arith.constant 0 : index
      %c0_11 = arith.constant 0 : index
      %12 = vector.load %arg7[%c0_10, %c0_11] : memref<2x1024xf32, #tpu.memory_space<vmem>>, vector<2x1024xf32>
      %c0_12 = arith.constant 0 : index
      %c0_13 = arith.constant 0 : index
      %13 = vector.load %arg3[%c0_12, %c0_13] : memref<1x1024xf32, #tpu.memory_space<vmem>>, vector<1x1024xf32>
      %14 = vector.broadcast %13 : vector<1x1024xf32> to vector<2x1024xf32>
      %15 = arith.addf %12, %14 : vector<2x1024xf32>
      %cst_14 = arith.constant 0.000000e+00 : f32
      %16 = vector.broadcast %cst_14 : f32 to vector<2x1024xf32>
      %17 = arith.maximumf %15, %16 : vector<2x1024xf32>
      %18 = arith.truncf %17 : vector<2x1024xf32> to vector<2x1024xbf16>
      %c0_15 = arith.constant 0 : index
      %c0_16 = arith.constant 0 : index
      %19 = vector.load %arg4[%c0_15, %c0_16] : memref<1024x128xbf16, #tpu.memory_space<vmem>>, vector<1024x128xbf16>
      %cst_17 = arith.constant dense<0.000000e+00> : vector<2x128xf32>
      %20 = tpu.matmul %18, %19, %cst_17 {dimension_numbers = #tpu.dot_dimension_numbers<[1], [0], [0], [1], [0, 0, 1, 1], [], []>} : vector<2x1024xbf16>, vector<1024x128xbf16>, vector<2x128xf32> -> vector<2x128xf32>
      %c0_18 = arith.constant 0 : index
      %c0_19 = arith.constant 0 : index
      %21 = vector.load %arg5[%c0_18, %c0_19] : memref<1x128xf32, #tpu.memory_space<vmem>>, vector<1x128xf32>
      %22 = vector.broadcast %21 : vector<1x128xf32> to vector<2x128xf32>
      %23 = arith.addf %20, %22 : vector<2x128xf32>
      %24 = vector.extract_strided_slice %23 {offsets = [0, 0], sizes = [2, 6], strides = [1, 1]} : vector<2x128xf32> to vector<2x6xf32>
      %25 = vector.extract_strided_slice %23 {offsets = [0, 6], sizes = [2, 1], strides = [1, 1]} : vector<2x128xf32> to vector<2x1xf32>
      %26 = vector.broadcast %25 : vector<2x1xf32> to vector<2x128xf32>
      %27 = arith.addf %26, %23 : vector<2x128xf32>
      %28 = vector.shape_cast %24 : vector<2x6xf32> to vector<1x2x6xf32>
      %cst_20 = arith.constant dense<0.000000e+00> : vector<1xf32>
      %29 = vector.multi_reduction <add>, %28, %cst_20 [1, 2] : vector<1x2x6xf32> to vector<1xf32>
      %30 = vector.shape_cast %29 : vector<1xf32> to vector<1x1x1xf32>
      %31 = vector.extract %30[0, 0, 0] : f32 from vector<1x1x1xf32>
      %cst_21 = arith.constant 1.200000e+01 : f32
      %32 = arith.divf %31, %cst_21 : f32
      %33 = vector.broadcast %32 : f32 to vector<2x128xf32>
      %34 = arith.subf %27, %33 : vector<2x128xf32>
      %c0_22 = arith.constant 0 : index
      %c0_23 = arith.constant 0 : index
      %35 = vector.load %arg6[%c0_22, %c0_23] : memref<2x128xf32, #tpu.memory_space<vmem>>, vector<2x128xf32>
      tpu.vector_store %arg6[%c0_22, %c0_23], %34 {strides = array<i32>} : memref<2x128xf32, #tpu.memory_space<vmem>>, vector<2x128xf32>,
    } else {
    }
    return
  }
  func.func @transform_0(%arg0: i32) -> (i32, i32) {
    %c0_i32 = arith.constant 0 : i32
    %c0_i32_0 = arith.constant 0 : i32
    return %c0_i32, %arg0 : i32, i32
  }
  func.func @transform_1(%arg0: i32) -> (i32, i32) {
    %c0_i32 = arith.constant 0 : i32
    %c0_i32_0 = arith.constant 0 : i32
    return %arg0, %c0_i32 : i32, i32
  }
  func.func @transform_2(%arg0: i32) -> (i32, i32) {
    %c0_i32 = arith.constant 0 : i32
    %c0_i32_0 = arith.constant 0 : i32
    %c0_i32_1 = arith.constant 0 : i32
    return %c0_i32, %c0_i32_0 : i32, i32
  }
  func.func @transform_3(%arg0: i32) -> (i32, i32) {
    %c0_i32 = arith.constant 0 : i32
    %c0_i32_0 = arith.constant 0 : i32
    %c0_i32_1 = arith.constant 0 : i32
    return %c0_i32, %c0_i32_0 : i32, i32
  }
  func.func @transform_4(%arg0: i32) -> (i32, i32) {
    %c0_i32 = arith.constant 0 : i32
    %c0_i32_0 = arith.constant 0 : i32
    %c0_i32_1 = arith.constant 0 : i32
    return %c0_i32, %c0_i32_0 : i32, i32
  }
  func.func @transform_5(%arg0: i32) -> (i32, i32) {
    %c0_i32 = arith.constant 0 : i32
    %c0_i32_0 = arith.constant 0 : i32
    %c0_i32_1 = arith.constant 0 : i32
    return %c0_i32, %c0_i32_0 : i32, i32
  }
}

</mosaic_0001>

<llo_original>
// kernel: dueling_dqn_forward.4
$region0: #{dueling_dqn_forward.4}
  #allocation0 [shape = 'u32[]', space=smem, size = 0x4, offset = 0x4, fixed_abs, tag = 'smem constant byte address 0x4 - core index']
  #allocation1 [shape = 'u32[72,128]{1,0:T(1,128)}', space=vmem, size = 0x9000, scoped, tag = 'internal scratch']
  %s0 = inlined_call_operand.vmem [shape: u8[128,256], index: 0, kind: input, shape index: {}]
  %s1 = inlined_call_operand.vmem [shape: bf16[256,128], index: 1, kind: input, shape index: {}]
  %s2 = inlined_call_operand.vmem [shape: f32[1,128], index: 2, kind: input, shape index: {}]
  %s3 = inlined_call_operand.vmem [shape: bf16[128,128], index: 3, kind: output, shape index: {}]
  %s4 = sld [smem:[#allocation0]]
  $region45: #{dueling_dqn_forward.4} parent=0
    _
  %s6 = ssub.s32 1, %s4
  %s7 = scalar_select 0, %s6, %s4
  loop: start=0, step=1, limit=4
  $region2: #{dueling_dqn_forward.4} parent=0 // loop_pre_header
    _
  $region3: #{dueling_dqn_forward.4} parent=0 // loop_header
    %s9 = sphi 0, %s13
    %p10 = scmp.ge.s32.totalorder %s9, 4
    %s19 = sphi 0, %s21
    %s22 = sphi 0, %s19
    %s23 = sphi 0, %s22
    %s39 = sphi 0, %s23
    %s43 = sphi 0, %s43
    %s45 = sphi 0, %s43
    %s46 = sphi 0, %s45
    %s60 = sphi 0, %s46
    %s64 = sphi 0, %s64
    %s66 = sphi 0, %s64
    %s67 = sphi 0, %s66
    %s81 = sphi 0, %s67
    %s87 = sphi 0, %s89
    %s90 = sphi 0, %s87
    %s91 = sphi 0, %s90
    %s107 = sphi 0, %s91
  $region4: #{dueling_dqn_forward.4} parent=0 // loop_header_branch
    %12 = sbr.rel (%p10) target = $region8
  $region5: #{dueling_dqn_forward.4} parent=0 // loop_body
    %s14 = ssub.s32 %s9, 1
    %s15 = ssub.s32 %s9, 2
    %s16 = sadd.s32 %s9, 1
    %s17 = ssub.s32 %s9, %s16
    %p18 = scmp.eq.s32.totalorder %s17, 0
    %s20 = sadd.s32 %s19, 1
    %s21 = scalar_select %p18, %s19, %s20
    %p24 = pneg %p18
    %p25 = scmp.eq.s32.totalorder %s9, 1
    %p26 = por %p24, %p25
    %p27 = scmp.ne.s32.totalorder %s19, %s22
    %p28 = scmp.eq.s32.totalorder %s9, 0
    %p29 = por %p27, %p28
    %p30 = scmp.ne.s32.totalorder %s19, %s22
    %p31 = scmp.eq.s32.totalorder %s14, 1
    %p32 = por %p30, %p31
    %p33 = scmp.ne.s32.totalorder %s22, %s23
    %p34 = scmp.eq.s32.totalorder %s14, 0
    %p35 = por %p33, %p34
    %p36 = scmp.ne.s32.totalorder %s22, %s23
    %p37 = scmp.eq.s32.totalorder %s15, 1
    %p38 = por %p36, %p37
    %p40 = scmp.ne.s32.totalorder %s23, %s39
    %p41 = scmp.eq.s32.totalorder %s15, 0
    %p42 = por %p40, %p41
    %s44 = sadd.s32 %s43, 1
    %p47 = scmp.eq.s32.totalorder %s9, 1
    %p48 = scmp.ne.s32.totalorder %s43, %s45
    %p49 = scmp.eq.s32.totalorder %s9, 0
    %p50 = por %p48, %p49
    %p51 = scmp.ne.s32.totalorder %s43, %s45
    %p52 = scmp.eq.s32.totalorder %s14, 1
    %p53 = por %p51, %p52
    %p54 = scmp.ne.s32.totalorder %s45, %s46
    %p55 = scmp.eq.s32.totalorder %s14, 0
    %p56 = por %p54, %p55
    %p57 = scmp.ne.s32.totalorder %s45, %s46
    %p58 = scmp.eq.s32.totalorder %s15, 1
    %p59 = por %p57, %p58
    %p61 = scmp.ne.s32.totalorder %s46, %s60
    %p62 = scmp.eq.s32.totalorder %s15, 0
    %p63 = por %p61, %p62
    %s65 = sadd.s32 %s64, 1
    %p68 = scmp.eq.s32.totalorder %s9, 1
    %p69 = scmp.ne.s32.totalorder %s64, %s66
    %p70 = scmp.eq.s32.totalorder %s9, 0
    %p71 = por %p69, %p70
    %p72 = scmp.ne.s32.totalorder %s64, %s66
    %p73 = scmp.eq.s32.totalorder %s14, 1
    %p74 = por %p72, %p73
    %p75 = scmp.ne.s32.totalorder %s66, %s67
    %p76 = scmp.eq.s32.totalorder %s14, 0
    %p77 = por %p75, %p76
    %p78 = scmp.ne.s32.totalorder %s66, %s67
    %p79 = scmp.eq.s32.totalorder %s15, 1
    %p80 = por %p78, %p79
    %p82 = scmp.ne.s32.totalorder %s67, %s81
    %p83 = scmp.eq.s32.totalorder %s15, 0
    %p84 = por %p82, %p83
    %s85 = ssub.s32 %s9, %s16
    %p86 = scmp.eq.s32.totalorder %s85, 0
    %s88 = sadd.s32 %s87, 1
    %s89 = scalar_select %p86, %s87, %s88
    %p92 = pneg %p86
    %p93 = scmp.eq.s32.totalorder %s9, 1
    %p94 = por %p92, %p93
    %p95 = scmp.ne.s32.totalorder %s87, %s90
    %p96 = scmp.eq.s32.totalorder %s9, 0
    %p97 = por %p95, %p96
    %p98 = scmp.ne.s32.totalorder %s87, %s90
    %p99 = scmp.eq.s32.totalorder %s14, 1
    %p100 = por %p98, %p99
    %p101 = scmp.ne.s32.totalorder %s90, %s91
    %p102 = scmp.eq.s32.totalorder %s14, 0
    %p103 = por %p101, %p102
    %p104 = scmp.ne.s32.totalorder %s90, %s91
    %p105 = scmp.eq.s32.totalorder %s15, 1
    %p106 = por %p104, %p105
    %p108 = scmp.ne.s32.totalorder %s91, %s107
    %p109 = scmp.eq.s32.totalorder %s15, 0
    %p110 = por %p108, %p109
    %p111 = scmp.le.s32.totalorder 1, %s9
    %p112 = scmp.lt.s32.totalorder %s9, 3
    %p113 = pnand %p111, %p112
    %p114 = pneg %p113
    // Predicated region
    $region9: #{dueling_dqn_forward.4} parent=5 // pred_check
      _
    $region10: #{dueling_dqn_forward.4} parent=5 // pred_check_branch
      %116 = sbr.rel (%p113) target = $region12
    $region11: #{dueling_dqn_forward.4} parent=5 // pred_region
      %s117 = ssub.s32 %s9, 1
      // Predicated region
      $region13: #{dueling_dqn_forward.4} parent=11 // pred_check
        %p118 = pneg %p56
      $region14: #{dueling_dqn_forward.4} parent=11 // pred_check_branch
        %120 = sbr.rel (%p118) target = $region16
      $region15: #{dueling_dqn_forward.4} parent=11 // pred_region
        _
      $region16: #{dueling_dqn_forward.4} parent=11 // pred_fallthru
        _
      // Predicated region
      $region17: #{dueling_dqn_forward.4} parent=11 // pred_check
        %p121 = pneg %p77
      $region18: #{dueling_dqn_forward.4} parent=11 // pred_check_branch
        %123 = sbr.rel (%p121) target = $region20
      $region19: #{dueling_dqn_forward.4} parent=11 // pred_region
        _
      $region20: #{dueling_dqn_forward.4} parent=11 // pred_fallthru
        _
    $region12: #{dueling_dqn_forward.4} parent=5 // pred_fallthru
      _
    %p124 = scmp.lt.s32.totalorder %s9, 2
    // Predicated region
    $region21: #{dueling_dqn_forward.4} parent=5 // pred_check
      %p125 = pneg %p124
    $region22: #{dueling_dqn_forward.4} parent=5 // pred_check_branch
      %127 = sbr.rel (%p125) target = $region24
    $region23: #{dueling_dqn_forward.4} parent=5 // pred_region
      // Predicated region
      $region25: #{dueling_dqn_forward.4} parent=23 // pred_check
        %p128 = pneg %p29
      $region26: #{dueling_dqn_forward.4} parent=23 // pred_check_branch
        %130 = sbr.rel (%p128) target = $region28
      $region27: #{dueling_dqn_forward.4} parent=23 // pred_region
        %s131 = smul.u32 2, %s9
        %p132 = scmp.lt.s32.totalorder %s131, 3
        %s133 = scalar_select %p132, %s131, 3
        %s134 = smul.addr %s133, 2
        %s135 = smul.addr %s134, 8
        %s136 = scalar_lea.vmem %s0, %s135
        %s137 = smul.u32 2, %s9
      $region28: #{dueling_dqn_forward.4} parent=23 // pred_fallthru
        _
    $region24: #{dueling_dqn_forward.4} parent=5 // pred_fallthru
      _
    %p138 = scmp.le.s32.totalorder 1, %s9
    %p139 = scmp.lt.s32.totalorder %s9, 3
    %p140 = pnand %p138, %p139
    %p141 = pneg %p140
    // Predicated region
    $region29: #{dueling_dqn_forward.4} parent=5 // pred_check
      _
    $region30: #{dueling_dqn_forward.4} parent=5 // pred_check_branch
      %143 = sbr.rel (%p140) target = $region32
    $region31: #{dueling_dqn_forward.4} parent=5 // pred_region
      %s144 = ssub.s32 %s9, 1
      %s145 = smul.u32 2, %s14
      %p146 = scmp.lt.s32.totalorder %s145, 3
      %s147 = scalar_select %p146, %s145, 3
      %s148 = smul.addr %s147, 2
      %s149 = smul.addr %s148, 8
      %s150 = scalar_lea.vmem %s0, %s149
      %p151 = pneg %p35
      %p152 = pneg %p32
      %p153 = pneg %p56
      %p154 = pneg %p53
      %p155 = pneg %p77
      %p156 = pneg %p74
      %p157 = pneg %p103
      %p158 = pneg %p100
      %s159 = smul.u32 8, %s14
      %p160 = scmp.lt.s32.totalorder %s159, 15
      %s161 = scalar_select %p160, %s159, 15
      %s162 = smul.addr %s161, 4
      %s163 = scalar_lea.vmem %s3, %s162
      %s164 = smul.u32 2, %s14
      %p165 = scmp.lt.s32.totalorder %s164, 3
      %s166 = scalar_select %p165, %s164, 3
      %s167 = smul.addr %s166, 2
      %s168 = smul.addr %s167, 8
      %s169 = scalar_lea.vmem %s0, %s168
      %s170 = smul.u32 2, %s14
      %s171 = smul.u32 8, %s14
      %p172 = scmp.lt.s32.totalorder %s171, 15
      %s173 = scalar_select %p172, %s171, 15
      %s174 = smul.addr %s173, 4
      %s175 = scalar_lea.vmem %s3, %s174
      %s176 = smul.u32 8, %s14
      %v177 = vld [vmem:[%s169] sm:$0xff]
      %v178 = vld [vmem:[%s169 + $0x8] sm:$0xff]
      %v179 = vld [vmem:[%s169 + $0x10] sm:$0xff]
      %v180 = vld [vmem:[%s169 + $0x18] sm:$0xff]
      %v181 = vunpack.c.0.s8 %v177
      %v182 = vunpack.c.0.s8 %v178
      %v183 = vunpack.c.1.s8 %v177
      %v184 = vunpack.c.1.s8 %v178
      %v185 = vunpack.c.2.s8 %v177
      %v186 = vunpack.c.2.s8 %v178
      %v187 = vunpack.c.3.s8 %v177
      %v188 = vunpack.c.3.s8 %v178
      %v189 = vunpack.c.0.s8 %v179
      %v190 = vunpack.c.0.s8 %v180
      %v191 = vunpack.c.1.s8 %v179
      %v192 = vunpack.c.1.s8 %v180
      %v193 = vunpack.c.2.s8 %v179
      %v194 = vunpack.c.2.s8 %v180
      %v195 = vunpack.c.3.s8 %v179
      %v196 = vunpack.c.3.s8 %v180
      %v197 = vand.u32 %v181, 255
      %v198 = vand.u32 %v182, 255
      %v199 = vand.u32 %v183, 255
      %v200 = vand.u32 %v184, 255
      %v201 = vand.u32 %v185, 255
      %v202 = vand.u32 %v186, 255
      %v203 = vand.u32 %v187, 255
      %v204 = vand.u32 %v188, 255
      %v205 = vand.u32 %v189, 255
      %v206 = vand.u32 %v190, 255
      %v207 = vand.u32 %v191, 255
      %v208 = vand.u32 %v192, 255
      %v209 = vand.u32 %v193, 255
      %v210 = vand.u32 %v194, 255
      %v211 = vand.u32 %v195, 255
      %v212 = vand.u32 %v196, 255
      %v213 = vcvt.s32.f32 %v197
      %v214 = vcvt.s32.f32 %v198
      %v215 = vcvt.s32.f32 %v199
      %v216 = vcvt.s32.f32 %v200
      %v217 = vcvt.s32.f32 %v201
      %v218 = vcvt.s32.f32 %v202
      %v219 = vcvt.s32.f32 %v203
      %v220 = vcvt.s32.f32 %v204
      %v221 = vcvt.s32.f32 %v205
      %v222 = vcvt.s32.f32 %v206
      %v223 = vcvt.s32.f32 %v207
      %v224 = vcvt.s32.f32 %v208
      %v225 = vcvt.s32.f32 %v209
      %v226 = vcvt.s32.f32 %v210
      %v227 = vcvt.s32.f32 %v211
      %v228 = vcvt.s32.f32 %v212
      %v229 = vmul.f32 %v213, 0.007843138
      %v230 = vmul.f32 %v214, 0.007843138
      %v231 = vmul.f32 %v215, 0.007843138
      %v232 = vmul.f32 %v216, 0.007843138
      %v233 = vmul.f32 %v217, 0.007843138
      %v234 = vmul.f32 %v218, 0.007843138
      %v235 = vmul.f32 %v219, 0.007843138
      %v236 = vmul.f32 %v220, 0.007843138
      %v237 = vmul.f32 %v221, 0.007843138
      %v238 = vmul.f32 %v222, 0.007843138
      %v239 = vmul.f32 %v223, 0.007843138
      %v240 = vmul.f32 %v224, 0.007843138
      %v241 = vmul.f32 %v225, 0.007843138
      %v242 = vmul.f32 %v226, 0.007843138
      %v243 = vmul.f32 %v227, 0.007843138
      %v244 = vmul.f32 %v228, 0.007843138
      %v245 = vsub.f32 %v229, 1.0
      %v246 = vsub.f32 %v230, 1.0
      %v247 = vsub.f32 %v231, 1.0
      %v248 = vsub.f32 %v232, 1.0
      %v249 = vsub.f32 %v233, 1.0
      %v250 = vsub.f32 %v234, 1.0
      %v251 = vsub.f32 %v235, 1.0
      %v252 = vsub.f32 %v236, 1.0
      %v253 = vsub.f32 %v237, 1.0
      %v254 = vsub.f32 %v238, 1.0
      %v255 = vsub.f32 %v239, 1.0
      %v256 = vsub.f32 %v240, 1.0
      %v257 = vsub.f32 %v241, 1.0
      %v258 = vsub.f32 %v242, 1.0
      %v259 = vsub.f32 %v243, 1.0
      %v260 = vsub.f32 %v244, 1.0
      %v261 = vpack.c.bf16 %v247, %v245
      %v262 = vpack.c.bf16 %v248, %v246
      %v263 = vpack.c.bf16 %v251, %v249
      %v264 = vpack.c.bf16 %v252, %v250
      %v265 = vpack.c.bf16 %v255, %v253
      %v266 = vpack.c.bf16 %v256, %v254
      %v267 = vpack.c.bf16 %v259, %v257
      %v268 = vpack.c.bf16 %v260, %v258
      %v269 = vld [vmem:[%s1] sm:$0xf]
      %v270 = vld [vmem:[%s1 + $0x4] sm:$0xf]
      %v271 = vld [vmem:[%s1 + $0x8] sm:$0xf]
      %v272 = vld [vmem:[%s1 + $0xc] sm:$0xf]
      %v273 = vld [vmem:[%s1 + $0x10] sm:$0xf]
      %v274 = vld [vmem:[%s1 + $0x14] sm:$0xf]
      %v275 = vld [vmem:[%s1 + $0x18] sm:$0xf]
      %v276 = vld [vmem:[%s1 + $0x1c] sm:$0xf]
      %v277 = vld [vmem:[%s1 + $0x20] sm:$0xf]
      %v278 = vld [vmem:[%s1 + $0x24] sm:$0xf]
      %v279 = vld [vmem:[%s1 + $0x28] sm:$0xf]
      %v280 = vld [vmem:[%s1 + $0x2c] sm:$0xf]
      %v281 = vld [vmem:[%s1 + $0x30] sm:$0xf]
      %v282 = vld [vmem:[%s1 + $0x34] sm:$0xf]
      %v283 = vld [vmem:[%s1 + $0x38] sm:$0xf]
      %v284 = vld [vmem:[%s1 + $0x3c] sm:$0xf]
      %v285 = vld [vmem:[%s1 + $0x40] sm:$0xf]
      %v286 = vld [vmem:[%s1 + $0x44] sm:$0xf]
      %v287 = vld [vmem:[%s1 + $0x48] sm:$0xf]
      %v288 = vld [vmem:[%s1 + $0x4c] sm:$0xf]
      %v289 = vld [vmem:[%s1 + $0x50] sm:$0xf]
      %v290 = vld [vmem:[%s1 + $0x54] sm:$0xf]
      %v291 = vld [vmem:[%s1 + $0x58] sm:$0xf]
      %v292 = vld [vmem:[%s1 + $0x5c] sm:$0xf]
      %v293 = vld [vmem:[%s1 + $0x60] sm:$0xf]
      %v294 = vld [vmem:[%s1 + $0x64] sm:$0xf]
      %v295 = vld [vmem:[%s1 + $0x68] sm:$0xf]
      %v296 = vld [vmem:[%s1 + $0x6c] sm:$0xf]
      %v297 = vld [vmem:[%s1 + $0x70] sm:$0xf]
      %v298 = vld [vmem:[%s1 + $0x74] sm:$0xf]
      %v299 = vld [vmem:[%s1 + $0x78] sm:$0xf]
      %v300 = vld [vmem:[%s1 + $0x7c] sm:$0xf]
      %v301 = vld [vmem:[%s2] sm:$0x1]
      %v303 = vperm.slane %v301, 0
      %v337 = vunpack.c.l.b16 %v269
      %v338 = vunpack.c.l.b16 %v270
      %v339 = vunpack.c.l.b16 %v271
      %v340 = vunpack.c.l.b16 %v272
      %v341 = vunpack.c.l.b16 %v273
      %v342 = vunpack.c.l.b16 %v274
      %v343 = vunpack.c.l.b16 %v275
      %v344 = vunpack.c.l.b16 %v276
      %v345 = vunpack.c.l.b16 %v277
      %v346 = vunpack.c.l.b16 %v278
      %v347 = vunpack.c.l.b16 %v279
      %v348 = vunpack.c.l.b16 %v280
      %v349 = vunpack.c.l.b16 %v281
      %v350 = vunpack.c.l.b16 %v282
      %v351 = vunpack.c.l.b16 %v283
      %v352 = vunpack.c.l.b16 %v284
      %v353 = vunpack.c.l.b16 %v285
      %v354 = vunpack.c.l.b16 %v286
      %v355 = vunpack.c.l.b16 %v287
      %v356 = vunpack.c.l.b16 %v288
      %v357 = vunpack.c.l.b16 %v289
      %v358 = vunpack.c.l.b16 %v290
      %v359 = vunpack.c.l.b16 %v291
      %v360 = vunpack.c.l.b16 %v292
      %v361 = vunpack.c.l.b16 %v293
      %v362 = vunpack.c.l.b16 %v294
      %v363 = vunpack.c.l.b16 %v295
      %v364 = vunpack.c.l.b16 %v296
      %v365 = vunpack.c.l.b16 %v297
      %v366 = vunpack.c.l.b16 %v298
      %v367 = vunpack.c.l.b16 %v299
      %v368 = vunpack.c.l.b16 %v300
      %v369 = vpack.c.b16 %v338, %v337
      %v370 = vpack.c.b16 %v340, %v339
      %v371 = vpack.c.b16 %v342, %v341
      %v372 = vpack.c.b16 %v344, %v343
      %v373 = vpack.c.b16 %v346, %v345
      %v374 = vpack.c.b16 %v348, %v347
      %v375 = vpack.c.b16 %v350, %v349
      %v376 = vpack.c.b16 %v352, %v351
      %v377 = vpack.c.b16 %v354, %v353
      %v378 = vpack.c.b16 %v356, %v355
      %v379 = vpack.c.b16 %v358, %v357
      %v380 = vpack.c.b16 %v360, %v359
      %v381 = vpack.c.b16 %v362, %v361
      %v382 = vpack.c.b16 %v364, %v363
      %v383 = vpack.c.b16 %v366, %v365
      %v384 = vpack.c.b16 %v368, %v367
      %401 = vmatpush.bf16.msra.mxu0 %v376
      %402 = vmatpush.bf16.msra.mxu0 %v375
      %403 = vmatpush.bf16.msra.mxu0 %v374
      %404 = vmatpush.bf16.msra.mxu0 %v373
      %405 = vmatpush.bf16.msra.mxu0 %v372
      %406 = vmatpush.bf16.msra.mxu0 %v371
      %407 = vmatpush.bf16.msra.mxu0 %v370
      %408 = vmatpush.bf16.msra.mxu0 %v369
      %409 = vmatmul.bf16.gmra.mxu0 %v261
      %v410 = vpop.f32.mrf.mxu0
      %v411 = vadd.f32 %v303, %v410
      %v412 = vpop.f32.mrf.mxu0
      %v413 = vadd.f32 %v303, %v412
      %414 = vmatmul.bf16.gmra.mxu0 %v263
      %v415 = vpop.f32.mrf.mxu0
      %v416 = vadd.f32 %v303, %v415
      %v417 = vpop.f32.mrf.mxu0
      %v418 = vadd.f32 %v303, %v417
      %419 = vmatmul.bf16.gmra.mxu0 %v265
      %v420 = vpop.f32.mrf.mxu0
      %v421 = vadd.f32 %v303, %v420
      %v422 = vpop.f32.mrf.mxu0
      %v423 = vadd.f32 %v303, %v422
      %424 = vmatmul.bf16.gmra.mxu0 %v267
      %v425 = vpop.f32.mrf.mxu0
      %v426 = vadd.f32 %v303, %v425
      %v427 = vpop.f32.mrf.mxu0
      %v428 = vadd.f32 %v303, %v427
      %429 = vdwg.mxu0
      %430 = vmatpush.bf16.msra.mxu0 %v384
      %431 = vmatpush.bf16.msra.mxu0 %v383
      %432 = vmatpush.bf16.msra.mxu0 %v382
      %433 = vmatpush.bf16.msra.mxu0 %v381
      %434 = vmatpush.bf16.msra.mxu0 %v380
      %435 = vmatpush.bf16.msra.mxu0 %v379
      %436 = vmatpush.bf16.msra.mxu0 %v378
      %437 = vmatpush.bf16.msra.mxu0 %v377
      %438 = vmatmul.bf16.gmra.mxu0 %v262
      %v439 = vpop.f32.mrf.mxu0
      %v440 = vadd.f32 %v411, %v439
      %v441 = vpop.f32.mrf.mxu0
      %v442 = vadd.f32 %v413, %v441
      %443 = vmatmul.bf16.gmra.mxu0 %v264
      %v444 = vpop.f32.mrf.mxu0
      %v445 = vadd.f32 %v416, %v444
      %v446 = vpop.f32.mrf.mxu0
      %v447 = vadd.f32 %v418, %v446
      %448 = vmatmul.bf16.gmra.mxu0 %v266
      %v449 = vpop.f32.mrf.mxu0
      %v450 = vadd.f32 %v421, %v449
      %v451 = vpop.f32.mrf.mxu0
      %v452 = vadd.f32 %v423, %v451
      %453 = vmatmul.bf16.gmra.mxu0 %v268
      %v454 = vpop.f32.mrf.mxu0
      %v455 = vadd.f32 %v426, %v454
      %v456 = vpop.f32.mrf.mxu0
      %v457 = vadd.f32 %v428, %v456
      %458 = vdwg.mxu0
      %v459 = vmax.f32 %v440, 0.0
      %v460 = vmax.f32 %v442, 0.0
      %v461 = vmax.f32 %v445, 0.0
      %v462 = vmax.f32 %v447, 0.0
      %v463 = vmax.f32 %v450, 0.0
      %v464 = vmax.f32 %v452, 0.0
      %v465 = vmax.f32 %v455, 0.0
      %v466 = vmax.f32 %v457, 0.0
      %v467 = vpack.c.bf16 %v459, %v459
      %v468 = vpack.c.bf16 %v460, %v460
      %v469 = vpack.c.bf16 %v461, %v461
      %v470 = vpack.c.bf16 %v462, %v462
      %v471 = vpack.c.bf16 %v463, %v463
      %v472 = vpack.c.bf16 %v464, %v464
      %v473 = vpack.c.bf16 %v465, %v465
      %v474 = vpack.c.bf16 %v466, %v466
      %475 = vst [vmem:[%s175] sm:$0xf] %v467
      %476 = vst [vmem:[%s175 + $0x4] sm:$0xf] %v468
      %477 = vst [vmem:[%s175 + $0x8] sm:$0xf] %v469
      %478 = vst [vmem:[%s175 + $0xc] sm:$0xf] %v470
      %479 = vst [vmem:[%s175 + $0x10] sm:$0xf] %v471
      %480 = vst [vmem:[%s175 + $0x14] sm:$0xf] %v472
      %481 = vst [vmem:[%s175 + $0x18] sm:$0xf] %v473
      %482 = vst [vmem:[%s175 + $0x1c] sm:$0xf] %v474
      %s483 = smul.u32 8, %s14
      %p484 = scmp.lt.s32.totalorder %s483, 15
      %s485 = scalar_select %p484, %s483, 15
      %s486 = smul.addr %s485, 4
      %s487 = scalar_lea.vmem %s3, %s486
      // Predicated region
      $region33: #{dueling_dqn_forward.4} parent=31 // pred_check
        %p488 = pneg %p100
      $region34: #{dueling_dqn_forward.4} parent=31 // pred_check_branch
        %490 = sbr.rel (%p488) target = $region36
      $region35: #{dueling_dqn_forward.4} parent=31 // pred_region
        %s491 = smul.u32 8, %s14
      $region36: #{dueling_dqn_forward.4} parent=31 // pred_fallthru
        _
    $region32: #{dueling_dqn_forward.4} parent=5 // pred_fallthru
      _
    %p492 = scmp.le.s32.totalorder 2, %s9
    // Predicated region
    $region37: #{dueling_dqn_forward.4} parent=5 // pred_check
      %p493 = pneg %p492
    $region38: #{dueling_dqn_forward.4} parent=5 // pred_check_branch
      %495 = sbr.rel (%p493) target = $region40
    $region39: #{dueling_dqn_forward.4} parent=5 // pred_region
      %s496 = ssub.s32 %s9, 2
      // Predicated region
      $region41: #{dueling_dqn_forward.4} parent=39 // pred_check
        %p497 = pneg %p106
      $region42: #{dueling_dqn_forward.4} parent=39 // pred_check_branch
        %499 = sbr.rel (%p497) target = $region44
      $region43: #{dueling_dqn_forward.4} parent=39 // pred_region
        %s500 = smul.u32 8, %s15
        %p501 = scmp.lt.s32.totalorder %s500, 15
        %s502 = scalar_select %p501, %s500, 15
        %s503 = smul.addr %s502, 4
        %s504 = scalar_lea.vmem %s3, %s503
      $region44: #{dueling_dqn_forward.4} parent=39 // pred_fallthru
        _
    $region40: #{dueling_dqn_forward.4} parent=5 // pred_fallthru
      _
  $region6: #{dueling_dqn_forward.4} parent=0 // loop_footer
    %s13 = sadd.s32 1, %s9
  $region7: #{dueling_dqn_forward.4} parent=0 // loop_footer_branch
    %8 = sbr.rel target = $region3
  $region8: #{dueling_dqn_forward.4} parent=0 // loop_exit
    _

// kernel: dueling_dqn_forward.5
$region0: #{dueling_dqn_forward.5}
  #allocation0 [shape = 'u32[]', space=smem, size = 0x4, offset = 0x4, fixed_abs, tag = 'smem constant byte address 0x4 - core index']
  #allocation1 [shape = 'u32[72,128]{1,0:T(1,128)}', space=vmem, size = 0x9000, scoped, tag = 'internal scratch']
  %s0 = inlined_call_operand.vmem [shape: bf16[32,512], index: 0, kind: input, shape index: {}]
  %s1 = inlined_call_operand.vmem [shape: bf16[512,128], index: 1, kind: input, shape index: {}]
  %s2 = inlined_call_operand.vmem [shape: f32[1,128], index: 2, kind: input, shape index: {}]
  %s3 = inlined_call_operand.vmem [shape: bf16[32,128], index: 3, kind: output, shape index: {}]
  %s4 = sld [smem:[#allocation0]]
  $region22: #{dueling_dqn_forward.5} parent=0
    _
  %s6 = ssub.s32 1, %s4
  %s7 = scalar_select 0, %s6, %s4
  // Predicated region
  $region2: #{dueling_dqn_forward.5} parent=0 // pred_check
    _
  $region3: #{dueling_dqn_forward.5} parent=0 // pred_check_branch
    %9 = sbr.rel (0) target = $region5
  $region4: #{dueling_dqn_forward.5} parent=0 // pred_region
    _
  $region5: #{dueling_dqn_forward.5} parent=0 // pred_fallthru
    _
  // Predicated region
  $region6: #{dueling_dqn_forward.5} parent=0 // pred_check
    _
  $region7: #{dueling_dqn_forward.5} parent=0 // pred_check_branch
    %11 = sbr.rel (0) target = $region9
  $region8: #{dueling_dqn_forward.5} parent=0 // pred_region
    _
  $region9: #{dueling_dqn_forward.5} parent=0 // pred_fallthru
    _
  // Predicated region
  $region10: #{dueling_dqn_forward.5} parent=0 // pred_check
    _
  $region11: #{dueling_dqn_forward.5} parent=0 // pred_check_branch
    %13 = sbr.rel (0) target = $region13
  $region12: #{dueling_dqn_forward.5} parent=0 // pred_region
    _
  $region13: #{dueling_dqn_forward.5} parent=0 // pred_fallthru
    _
  %v14 = vld [vmem:[%s0] sm:$0xff]
  %v15 = vld [vmem:[%s0 + $0x8] sm:$0xff]
  %v16 = vld [vmem:[%s0 + $0x10] sm:$0xff]
  %v17 = vld [vmem:[%s0 + $0x18] sm:$0xff]
  %v18 = vld [vmem:[%s0 + $0x20] sm:$0xff]
  %v19 = vld [vmem:[%s0 + $0x28] sm:$0xff]
  %v20 = vld [vmem:[%s0 + $0x30] sm:$0xff]
  %v21 = vld [vmem:[%s0 + $0x38] sm:$0xff]
  %v22 = vld [vmem:[%s1] sm:$0xf]
  %v23 = vld [vmem:[%s1 + $0x4] sm:$0xf]
  %v24 = vld [vmem:[%s1 + $0x8] sm:$0xf]
  %v25 = vld [vmem:[%s1 + $0xc] sm:$0xf]
  %v26 = vld [vmem:[%s1 + $0x10] sm:$0xf]
  %v27 = vld [vmem:[%s1 + $0x14] sm:$0xf]
  %v28 = vld [vmem:[%s1 + $0x18] sm:$0xf]
  %v29 = vld [vmem:[%s1 + $0x1c] sm:$0xf]
  %v30 = vld [vmem:[%s1 + $0x20] sm:$0xf]
  %v31 = vld [vmem:[%s1 + $0x24] sm:$0xf]
  %v32 = vld [vmem:[%s1 + $0x28] sm:$0xf]
  %v33 = vld [vmem:[%s1 + $0x2c] sm:$0xf]
  %v34 = vld [vmem:[%s1 + $0x30] sm:$0xf]
  %v35 = vld [vmem:[%s1 + $0x34] sm:$0xf]
  %v36 = vld [vmem:[%s1 + $0x38] sm:$0xf]
  %v37 = vld [vmem:[%s1 + $0x3c] sm:$0xf]
  %v38 = vld [vmem:[%s1 + $0x40] sm:$0xf]
  %v39 = vld [vmem:[%s1 + $0x44] sm:$0xf]
  %v40 = vld [vmem:[%s1 + $0x48] sm:$0xf]
  %v41 = vld [vmem:[%s1 + $0x4c] sm:$0xf]
  %v42 = vld [vmem:[%s1 + $0x50] sm:$0xf]
  %v43 = vld [vmem:[%s1 + $0x54] sm:$0xf]
  %v44 = vld [vmem:[%s1 + $0x58] sm:$0xf]
  %v45 = vld [vmem:[%s1 + $0x5c] sm:$0xf]
  %v46 = vld [vmem:[%s1 + $0x60] sm:$0xf]
  %v47 = vld [vmem:[%s1 + $0x64] sm:$0xf]
  %v48 = vld [vmem:[%s1 + $0x68] sm:$0xf]
  %v49 = vld [vmem:[%s1 + $0x6c] sm:$0xf]
  %v50 = vld [vmem:[%s1 + $0x70] sm:$0xf]
  %v51 = vld [vmem:[%s1 + $0x74] sm:$0xf]
  %v52 = vld [vmem:[%s1 + $0x78] sm:$0xf]
  %v53 = vld [vmem:[%s1 + $0x7c] sm:$0xf]
  %v54 = vld [vmem:[%s1 + $0x80] sm:$0xf]
  %v55 = vld [vmem:[%s1 + $0x84] sm:$0xf]
  %v56 = vld [vmem:[%s1 + $0x88] sm:$0xf]
  %v57 = vld [vmem:[%s1 + $0x8c] sm:$0xf]
  %v58 = vld [vmem:[%s1 + $0x90] sm:$0xf]
  %v59 = vld [vmem:[%s1 + $0x94] sm:$0xf]
  %v60 = vld [vmem:[%s1 + $0x98] sm:$0xf]
  %v61 = vld [vmem:[%s1 + $0x9c] sm:$0xf]
  %v62 = vld [vmem:[%s1 + $0xa0] sm:$0xf]
  %v63 = vld [vmem:[%s1 + $0xa4] sm:$0xf]
  %v64 = vld [vmem:[%s1 + $0xa8] sm:$0xf]
  %v65 = vld [vmem:[%s1 + $0xac] sm:$0xf]
  %v66 = vld [vmem:[%s1 + $0xb0] sm:$0xf]
  %v67 = vld [vmem:[%s1 + $0xb4] sm:$0xf]
  %v68 = vld [vmem:[%s1 + $0xb8] sm:$0xf]
  %v69 = vld [vmem:[%s1 + $0xbc] sm:$0xf]
  %v70 = vld [vmem:[%s1 + $0xc0] sm:$0xf]
  %v71 = vld [vmem:[%s1 + $0xc4] sm:$0xf]
  %v72 = vld [vmem:[%s1 + $0xc8] sm:$0xf]
  %v73 = vld [vmem:[%s1 + $0xcc] sm:$0xf]
  %v74 = vld [vmem:[%s1 + $0xd0] sm:$0xf]
  %v75 = vld [vmem:[%s1 + $0xd4] sm:$0xf]
  %v76 = vld [vmem:[%s1 + $0xd8] sm:$0xf]
  %v77 = vld [vmem:[%s1 + $0xdc] sm:$0xf]
  %v78 = vld [vmem:[%s1 + $0xe0] sm:$0xf]
  %v79 = vld [vmem:[%s1 + $0xe4] sm:$0xf]
  %v80 = vld [vmem:[%s1 + $0xe8] sm:$0xf]
  %v81 = vld [vmem:[%s1 + $0xec] sm:$0xf]
  %v82 = vld [vmem:[%s1 + $0xf0] sm:$0xf]
  %v83 = vld [vmem:[%s1 + $0xf4] sm:$0xf]
  %v84 = vld [vmem:[%s1 + $0xf8] sm:$0xf]
  %v85 = vld [vmem:[%s1 + $0xfc] sm:$0xf]
  %v86 = vld [vmem:[%s2] sm:$0x1]
  %v88 = vperm.slane %v86, 0
  %v98 = vunpack.c.l.b16 %v14
  %v99 = vunpack.c.h.b16 %v14
  %v100 = vunpack.c.l.b16 %v15
  %v101 = vunpack.c.h.b16 %v15
  %v102 = vunpack.c.l.b16 %v16
  %v103 = vunpack.c.h.b16 %v16
  %v104 = vunpack.c.l.b16 %v17
  %v105 = vunpack.c.h.b16 %v17
  %v106 = vunpack.c.l.b16 %v18
  %v107 = vunpack.c.h.b16 %v18
  %v108 = vunpack.c.l.b16 %v19
  %v109 = vunpack.c.h.b16 %v19
  %v110 = vunpack.c.l.b16 %v20
  %v111 = vunpack.c.h.b16 %v20
  %v112 = vunpack.c.l.b16 %v21
  %v113 = vunpack.c.h.b16 %v21
  %v114 = vpack.c.b16 %v102, %v98
  %v115 = vpack.c.b16 %v103, %v99
  %v116 = vpack.c.b16 %v104, %v100
  %v117 = vpack.c.b16 %v105, %v101
  %v118 = vpack.c.b16 %v110, %v106
  %v119 = vpack.c.b16 %v111, %v107
  %v120 = vpack.c.b16 %v112, %v108
  %v121 = vpack.c.b16 %v113, %v109
  %v194 = vunpack.c.l.b16 %v22
  %v195 = vunpack.c.l.b16 %v23
  %v196 = vunpack.c.l.b16 %v24
  %v197 = vunpack.c.l.b16 %v25
  %v198 = vunpack.c.l.b16 %v26
  %v199 = vunpack.c.l.b16 %v27
  %v200 = vunpack.c.l.b16 %v28
  %v201 = vunpack.c.l.b16 %v29
  %v202 = vunpack.c.l.b16 %v30
  %v203 = vunpack.c.l.b16 %v31
  %v204 = vunpack.c.l.b16 %v32
  %v205 = vunpack.c.l.b16 %v33
  %v206 = vunpack.c.l.b16 %v34
  %v207 = vunpack.c.l.b16 %v35
  %v208 = vunpack.c.l.b16 %v36
  %v209 = vunpack.c.l.b16 %v37
  %v210 = vunpack.c.l.b16 %v38
  %v211 = vunpack.c.l.b16 %v39
  %v212 = vunpack.c.l.b16 %v40
  %v213 = vunpack.c.l.b16 %v41
  %v214 = vunpack.c.l.b16 %v42
  %v215 = vunpack.c.l.b16 %v43
  %v216 = vunpack.c.l.b16 %v44
  %v217 = vunpack.c.l.b16 %v45
  %v218 = vunpack.c.l.b16 %v46
  %v219 = vunpack.c.l.b16 %v47
  %v220 = vunpack.c.l.b16 %v48
  %v221 = vunpack.c.l.b16 %v49
  %v222 = vunpack.c.l.b16 %v50
  %v223 = vunpack.c.l.b16 %v51
  %v224 = vunpack.c.l.b16 %v52
  %v225 = vunpack.c.l.b16 %v53
  %v226 = vunpack.c.l.b16 %v54
  %v227 = vunpack.c.l.b16 %v55
  %v228 = vunpack.c.l.b16 %v56
  %v229 = vunpack.c.l.b16 %v57
  %v230 = vunpack.c.l.b16 %v58
  %v231 = vunpack.c.l.b16 %v59
  %v232 = vunpack.c.l.b16 %v60
  %v233 = vunpack.c.l.b16 %v61
  %v234 = vunpack.c.l.b16 %v62
  %v235 = vunpack.c.l.b16 %v63
  %v236 = vunpack.c.l.b16 %v64
  %v237 = vunpack.c.l.b16 %v65
  %v238 = vunpack.c.l.b16 %v66
  %v239 = vunpack.c.l.b16 %v67
  %v240 = vunpack.c.l.b16 %v68
  %v241 = vunpack.c.l.b16 %v69
  %v242 = vunpack.c.l.b16 %v70
  %v243 = vunpack.c.l.b16 %v71
  %v244 = vunpack.c.l.b16 %v72
  %v245 = vunpack.c.l.b16 %v73
  %v246 = vunpack.c.l.b16 %v74
  %v247 = vunpack.c.l.b16 %v75
  %v248 = vunpack.c.l.b16 %v76
  %v249 = vunpack.c.l.b16 %v77
  %v250 = vunpack.c.l.b16 %v78
  %v251 = vunpack.c.l.b16 %v79
  %v252 = vunpack.c.l.b16 %v80
  %v253 = vunpack.c.l.b16 %v81
  %v254 = vunpack.c.l.b16 %v82
  %v255 = vunpack.c.l.b16 %v83
  %v256 = vunpack.c.l.b16 %v84
  %v257 = vunpack.c.l.b16 %v85
  %v258 = vpack.c.b16 %v195, %v194
  %v259 = vpack.c.b16 %v197, %v196
  %v260 = vpack.c.b16 %v199, %v198
  %v261 = vpack.c.b16 %v201, %v200
  %v262 = vpack.c.b16 %v203, %v202
  %v263 = vpack.c.b16 %v205, %v204
  %v264 = vpack.c.b16 %v207, %v206
  %v265 = vpack.c.b16 %v209, %v208
  %v266 = vpack.c.b16 %v211, %v210
  %v267 = vpack.c.b16 %v213, %v212
  %v268 = vpack.c.b16 %v215, %v214
  %v269 = vpack.c.b16 %v217, %v216
  %v270 = vpack.c.b16 %v219, %v218
  %v271 = vpack.c.b16 %v221, %v220
  %v272 = vpack.c.b16 %v223, %v222
  %v273 = vpack.c.b16 %v225, %v224
  %v274 = vpack.c.b16 %v227, %v226
  %v275 = vpack.c.b16 %v229, %v228
  %v276 = vpack.c.b16 %v231, %v230
  %v277 = vpack.c.b16 %v233, %v232
  %v278 = vpack.c.b16 %v235, %v234
  %v279 = vpack.c.b16 %v237, %v236
  %v280 = vpack.c.b16 %v239, %v238
  %v281 = vpack.c.b16 %v241, %v240
  %v282 = vpack.c.b16 %v243, %v242
  %v283 = vpack.c.b16 %v245, %v244
  %v284 = vpack.c.b16 %v247, %v246
  %v285 = vpack.c.b16 %v249, %v248
  %v286 = vpack.c.b16 %v251, %v250
  %v287 = vpack.c.b16 %v253, %v252
  %v288 = vpack.c.b16 %v255, %v254
  %v289 = vpack.c.b16 %v257, %v256
  %322 = vmatpush.bf16.msra.mxu0 %v265
  %323 = vmatpush.bf16.msra.mxu0 %v264
  %324 = vmatpush.bf16.msra.mxu0 %v263
  %325 = vmatpush.bf16.msra.mxu0 %v262
  %326 = vmatpush.bf16.msra.mxu0 %v261
  %327 = vmatpush.bf16.msra.mxu0 %v260
  %328 = vmatpush.bf16.msra.mxu0 %v259
  %329 = vmatpush.bf16.msra.mxu0 %v258
  %330 = vmatmul.bf16.gmra.mxu0 %v114
  %v331 = vpop.f32.mrf.mxu0
  %v332 = vadd.f32 %v88, %v331
  %v333 = vpop.f32.mrf.mxu0
  %v334 = vadd.f32 %v88, %v333
  %335 = vmatmul.bf16.gmra.mxu0 %v118
  %v336 = vpop.f32.mrf.mxu0
  %v337 = vadd.f32 %v88, %v336
  %v338 = vpop.f32.mrf.mxu0
  %v339 = vadd.f32 %v88, %v338
  %340 = vdwg.mxu0
  %341 = vmatpush.bf16.msra.mxu0 %v273
  %342 = vmatpush.bf16.msra.mxu0 %v272
  %343 = vmatpush.bf16.msra.mxu0 %v271
  %344 = vmatpush.bf16.msra.mxu0 %v270
  %345 = vmatpush.bf16.msra.mxu0 %v269
  %346 = vmatpush.bf16.msra.mxu0 %v268
  %347 = vmatpush.bf16.msra.mxu0 %v267
  %348 = vmatpush.bf16.msra.mxu0 %v266
  %349 = vmatmul.bf16.gmra.mxu0 %v115
  %v350 = vpop.f32.mrf.mxu0
  %v351 = vadd.f32 %v332, %v350
  %v352 = vpop.f32.mrf.mxu0
  %v353 = vadd.f32 %v334, %v352
  %354 = vmatmul.bf16.gmra.mxu0 %v119
  %v355 = vpop.f32.mrf.mxu0
  %v356 = vadd.f32 %v337, %v355
  %v357 = vpop.f32.mrf.mxu0
  %v358 = vadd.f32 %v339, %v357
  %359 = vdwg.mxu0
  %360 = vmatpush.bf16.msra.mxu0 %v281
  %361 = vmatpush.bf16.msra.mxu0 %v280
  %362 = vmatpush.bf16.msra.mxu0 %v279
  %363 = vmatpush.bf16.msra.mxu0 %v278
  %364 = vmatpush.bf16.msra.mxu0 %v277
  %365 = vmatpush.bf16.msra.mxu0 %v276
  %366 = vmatpush.bf16.msra.mxu0 %v275
  %367 = vmatpush.bf16.msra.mxu0 %v274
  %368 = vmatmul.bf16.gmra.mxu0 %v116
  %v369 = vpop.f32.mrf.mxu0
  %v370 = vadd.f32 %v351, %v369
  %v371 = vpop.f32.mrf.mxu0
  %v372 = vadd.f32 %v353, %v371
  %373 = vmatmul.bf16.gmra.mxu0 %v120
  %v374 = vpop.f32.mrf.mxu0
  %v375 = vadd.f32 %v356, %v374
  %v376 = vpop.f32.mrf.mxu0
  %v377 = vadd.f32 %v358, %v376
  %378 = vdwg.mxu0
  %379 = vmatpush.bf16.msra.mxu0 %v289
  %380 = vmatpush.bf16.msra.mxu0 %v288
  %381 = vmatpush.bf16.msra.mxu0 %v287
  %382 = vmatpush.bf16.msra.mxu0 %v286
  %383 = vmatpush.bf16.msra.mxu0 %v285
  %384 = vmatpush.bf16.msra.mxu0 %v284
  %385 = vmatpush.bf16.msra.mxu0 %v283
  %386 = vmatpush.bf16.msra.mxu0 %v282
  %387 = vmatmul.bf16.gmra.mxu0 %v117
  %v388 = vpop.f32.mrf.mxu0
  %v389 = vadd.f32 %v370, %v388
  %v390 = vpop.f32.mrf.mxu0
  %v391 = vadd.f32 %v372, %v390
  %392 = vmatmul.bf16.gmra.mxu0 %v121
  %v393 = vpop.f32.mrf.mxu0
  %v394 = vadd.f32 %v375, %v393
  %v395 = vpop.f32.mrf.mxu0
  %v396 = vadd.f32 %v377, %v395
  %397 = vdwg.mxu0
  %v398 = vmax.f32 %v389, 0.0
  %v399 = vmax.f32 %v391, 0.0
  %v400 = vmax.f32 %v394, 0.0
  %v401 = vmax.f32 %v396, 0.0
  %v402 = vpack.c.bf16 %v398, %v398
  %v403 = vpack.c.bf16 %v399, %v399
  %v404 = vpack.c.bf16 %v400, %v400
  %v405 = vpack.c.bf16 %v401, %v401
  %406 = vst [vmem:[%s3] sm:$0xf] %v402
  %407 = vst [vmem:[%s3 + $0x4] sm:$0xf] %v403
  %408 = vst [vmem:[%s3 + $0x8] sm:$0xf] %v404
  %409 = vst [vmem:[%s3 + $0xc] sm:$0xf] %v405
  // Predicated region
  $region14: #{dueling_dqn_forward.5} parent=0 // pred_check
    _
  $region15: #{dueling_dqn_forward.5} parent=0 // pred_check_branch
    %411 = sbr.rel (0) target = $region17
  $region16: #{dueling_dqn_forward.5} parent=0 // pred_region
    _
  $region17: #{dueling_dqn_forward.5} parent=0 // pred_fallthru
    _
  // Predicated region
  $region18: #{dueling_dqn_forward.5} parent=0 // pred_check
    _
  $region19: #{dueling_dqn_forward.5} parent=0 // pred_check_branch
    %413 = sbr.rel (0) target = $region21
  $region20: #{dueling_dqn_forward.5} parent=0 // pred_region
    _
  $region21: #{dueling_dqn_forward.5} parent=0 // pred_fallthru
    _

// kernel: dueling_dqn_forward.6
$region0: #{dueling_dqn_forward.6}
  #allocation0 [shape = 'u32[]', space=smem, size = 0x4, offset = 0x4, fixed_abs, tag = 'smem constant byte address 0x4 - core index']
  #allocation1 [shape = 'u32[72,128]{1,0:T(1,128)}', space=vmem, size = 0x9000, scoped, tag = 'internal scratch']
  %s0 = inlined_call_operand.vmem [shape: bf16[32,576], index: 0, kind: input, shape index: {}]
  %s1 = inlined_call_operand.vmem [shape: bf16[576,128], index: 1, kind: input, shape index: {}]
  %s2 = inlined_call_operand.vmem [shape: f32[1,128], index: 2, kind: input, shape index: {}]
  %s3 = inlined_call_operand.vmem [shape: bf16[32,128], index: 3, kind: output, shape index: {}]
  %s4 = sld [smem:[#allocation0]]
  $region22: #{dueling_dqn_forward.6} parent=0
    _
  %s6 = ssub.s32 1, %s4
  %s7 = scalar_select 0, %s6, %s4
  // Predicated region
  $region2: #{dueling_dqn_forward.6} parent=0 // pred_check
    _
  $region3: #{dueling_dqn_forward.6} parent=0 // pred_check_branch
    %9 = sbr.rel (0) target = $region5
  $region4: #{dueling_dqn_forward.6} parent=0 // pred_region
    _
  $region5: #{dueling_dqn_forward.6} parent=0 // pred_fallthru
    _
  // Predicated region
  $region6: #{dueling_dqn_forward.6} parent=0 // pred_check
    _
  $region7: #{dueling_dqn_forward.6} parent=0 // pred_check_branch
    %11 = sbr.rel (0) target = $region9
  $region8: #{dueling_dqn_forward.6} parent=0 // pred_region
    _
  $region9: #{dueling_dqn_forward.6} parent=0 // pred_fallthru
    _
  // Predicated region
  $region10: #{dueling_dqn_forward.6} parent=0 // pred_check
    _
  $region11: #{dueling_dqn_forward.6} parent=0 // pred_check_branch
    %13 = sbr.rel (0) target = $region13
  $region12: #{dueling_dqn_forward.6} parent=0 // pred_region
    _
  $region13: #{dueling_dqn_forward.6} parent=0 // pred_fallthru
    _
  %v15 = vld [vmem:[%s0] sm:$0xff]
  %v16 = vld [vmem:[%s0 + $0x8] sm:$0xff]
  %v17 = vld [vmem:[%s0 + $0x10] sm:$0xf]
  %v18 = vld [vmem:[%s0 + $0x14] sm:$0xff]
  %v19 = vld [vmem:[%s0 + $0x1c] sm:$0xff]
  %v20 = vld [vmem:[%s0 + $0x24] sm:$0xf]
  %v21 = vld [vmem:[%s0 + $0x28] sm:$0xff]
  %v22 = vld [vmem:[%s0 + $0x30] sm:$0xff]
  %v23 = vld [vmem:[%s0 + $0x38] sm:$0xf]
  %v24 = vld [vmem:[%s0 + $0x3c] sm:$0xff]
  %v25 = vld [vmem:[%s0 + $0x44] sm:$0xff]
  %v26 = vld [vmem:[%s0 + $0x4c] sm:$0xf]
  %v27 = vld [vmem:[%s1] sm:$0xf]
  %v28 = vld [vmem:[%s1 + $0x4] sm:$0xf]
  %v29 = vld [vmem:[%s1 + $0x8] sm:$0xf]
  %v30 = vld [vmem:[%s1 + $0xc] sm:$0xf]
  %v31 = vld [vmem:[%s1 + $0x10] sm:$0xf]
  %v32 = vld [vmem:[%s1 + $0x14] sm:$0xf]
  %v33 = vld [vmem:[%s1 + $0x18] sm:$0xf]
  %v34 = vld [vmem:[%s1 + $0x1c] sm:$0xf]
  %v35 = vld [vmem:[%s1 + $0x20] sm:$0xf]
  %v36 = vld [vmem:[%s1 + $0x24] sm:$0xf]
  %v37 = vld [vmem:[%s1 + $0x28] sm:$0xf]
  %v38 = vld [vmem:[%s1 + $0x2c] sm:$0xf]
  %v39 = vld [vmem:[%s1 + $0x30] sm:$0xf]
  %v40 = vld [vmem:[%s1 + $0x34] sm:$0xf]
  %v41 = vld [vmem:[%s1 + $0x38] sm:$0xf]
  %v42 = vld [vmem:[%s1 + $0x3c] sm:$0xf]
  %v43 = vld [vmem:[%s1 + $0x40] sm:$0xf]
  %v44 = vld [vmem:[%s1 + $0x44] sm:$0xf]
  %v45 = vld [vmem:[%s1 + $0x48] sm:$0xf]
  %v46 = vld [vmem:[%s1 + $0x4c] sm:$0xf]
  %v47 = vld [vmem:[%s1 + $0x50] sm:$0xf]
  %v48 = vld [vmem:[%s1 + $0x54] sm:$0xf]
  %v49 = vld [vmem:[%s1 + $0x58] sm:$0xf]
  %v50 = vld [vmem:[%s1 + $0x5c] sm:$0xf]
  %v51 = vld [vmem:[%s1 + $0x60] sm:$0xf]
  %v52 = vld [vmem:[%s1 + $0x64] sm:$0xf]
  %v53 = vld [vmem:[%s1 + $0x68] sm:$0xf]
  %v54 = vld [vmem:[%s1 + $0x6c] sm:$0xf]
  %v55 = vld [vmem:[%s1 + $0x70] sm:$0xf]
  %v56 = vld [vmem:[%s1 + $0x74] sm:$0xf]
  %v57 = vld [vmem:[%s1 + $0x78] sm:$0xf]
  %v58 = vld [vmem:[%s1 + $0x7c] sm:$0xf]
  %v59 = vld [vmem:[%s1 + $0x80] sm:$0xf]
  %v60 = vld [vmem:[%s1 + $0x84] sm:$0xf]
  %v61 = vld [vmem:[%s1 + $0x88] sm:$0xf]
  %v62 = vld [vmem:[%s1 + $0x8c] sm:$0xf]
  %v63 = vld [vmem:[%s1 + $0x90] sm:$0xf]
  %v64 = vld [vmem:[%s1 + $0x94] sm:$0xf]
  %v65 = vld [vmem:[%s1 + $0x98] sm:$0xf]
  %v66 = vld [vmem:[%s1 + $0x9c] sm:$0xf]
  %v67 = vld [vmem:[%s1 + $0xa0] sm:$0xf]
  %v68 = vld [vmem:[%s1 + $0xa4] sm:$0xf]
  %v69 = vld [vmem:[%s1 + $0xa8] sm:$0xf]
  %v70 = vld [vmem:[%s1 + $0xac] sm:$0xf]
  %v71 = vld [vmem:[%s1 + $0xb0] sm:$0xf]
  %v72 = vld [vmem:[%s1 + $0xb4] sm:$0xf]
  %v73 = vld [vmem:[%s1 + $0xb8] sm:$0xf]
  %v74 = vld [vmem:[%s1 + $0xbc] sm:$0xf]
  %v75 = vld [vmem:[%s1 + $0xc0] sm:$0xf]
  %v76 = vld [vmem:[%s1 + $0xc4] sm:$0xf]
  %v77 = vld [vmem:[%s1 + $0xc8] sm:$0xf]
  %v78 = vld [vmem:[%s1 + $0xcc] sm:$0xf]
  %v79 = vld [vmem:[%s1 + $0xd0] sm:$0xf]
  %v80 = vld [vmem:[%s1 + $0xd4] sm:$0xf]
  %v81 = vld [vmem:[%s1 + $0xd8] sm:$0xf]
  %v82 = vld [vmem:[%s1 + $0xdc] sm:$0xf]
  %v83 = vld [vmem:[%s1 + $0xe0] sm:$0xf]
  %v84 = vld [vmem:[%s1 + $0xe4] sm:$0xf]
  %v85 = vld [vmem:[%s1 + $0xe8] sm:$0xf]
  %v86 = vld [vmem:[%s1 + $0xec] sm:$0xf]
  %v87 = vld [vmem:[%s1 + $0xf0] sm:$0xf]
  %v88 = vld [vmem:[%s1 + $0xf4] sm:$0xf]
  %v89 = vld [vmem:[%s1 + $0xf8] sm:$0xf]
  %v90 = vld [vmem:[%s1 + $0xfc] sm:$0xf]
  %v91 = vld [vmem:[%s1 + $0x100] sm:$0xf]
  %v92 = vld [vmem:[%s1 + $0x104] sm:$0xf]
  %v93 = vld [vmem:[%s1 + $0x108] sm:$0xf]
  %v94 = vld [vmem:[%s1 + $0x10c] sm:$0xf]
  %v95 = vld [vmem:[%s1 + $0x110] sm:$0xf]
  %v96 = vld [vmem:[%s1 + $0x114] sm:$0xf]
  %v97 = vld [vmem:[%s1 + $0x118] sm:$0xf]
  %v98 = vld [vmem:[%s1 + $0x11c] sm:$0xf]
  %v99 = vld [vmem:[%s2] sm:$0x1]
  %v101 = vperm.slane %v99, 0
  %v115 = vunpack.c.l.b16 %v15
  %v116 = vunpack.c.h.b16 %v15
  %v117 = vunpack.c.l.b16 %v16
  %v118 = vunpack.c.h.b16 %v16
  %v119 = vunpack.c.l.b16 %v17
  %v120 = vunpack.c.l.b16 %v18
  %v121 = vunpack.c.h.b16 %v18
  %v122 = vunpack.c.l.b16 %v19
  %v123 = vunpack.c.h.b16 %v19
  %v124 = vunpack.c.l.b16 %v20
  %v125 = vunpack.c.l.b16 %v21
  %v126 = vunpack.c.h.b16 %v21
  %v127 = vunpack.c.l.b16 %v22
  %v128 = vunpack.c.h.b16 %v22
  %v129 = vunpack.c.l.b16 %v23
  %v130 = vunpack.c.l.b16 %v24
  %v131 = vunpack.c.h.b16 %v24
  %v132 = vunpack.c.l.b16 %v25
  %v133 = vunpack.c.h.b16 %v25
  %v134 = vunpack.c.l.b16 %v26
  %v135 = vpack.c.b16 %v120, %v115
  %v136 = vpack.c.b16 %v121, %v116
  %v137 = vpack.c.b16 %v122, %v117
  %v138 = vpack.c.b16 %v123, %v118
  %v139 = vpack.c.b16 %v124, %v119
  %v140 = vpack.c.b16 %v130, %v125
  %v141 = vpack.c.b16 %v131, %v126
  %v142 = vpack.c.b16 %v132, %v127
  %v143 = vpack.c.b16 %v133, %v128
  %v144 = vpack.c.b16 %v134, %v129
  %v225 = vunpack.c.l.b16 %v27
  %v226 = vunpack.c.l.b16 %v28
  %v227 = vunpack.c.l.b16 %v29
  %v228 = vunpack.c.l.b16 %v30
  %v229 = vunpack.c.l.b16 %v31
  %v230 = vunpack.c.l.b16 %v32
  %v231 = vunpack.c.l.b16 %v33
  %v232 = vunpack.c.l.b16 %v34
  %v233 = vunpack.c.l.b16 %v35
  %v234 = vunpack.c.l.b16 %v36
  %v235 = vunpack.c.l.b16 %v37
  %v236 = vunpack.c.l.b16 %v38
  %v237 = vunpack.c.l.b16 %v39
  %v238 = vunpack.c.l.b16 %v40
  %v239 = vunpack.c.l.b16 %v41
  %v240 = vunpack.c.l.b16 %v42
  %v241 = vunpack.c.l.b16 %v43
  %v242 = vunpack.c.l.b16 %v44
  %v243 = vunpack.c.l.b16 %v45
  %v244 = vunpack.c.l.b16 %v46
  %v245 = vunpack.c.l.b16 %v47
  %v246 = vunpack.c.l.b16 %v48
  %v247 = vunpack.c.l.b16 %v49
  %v248 = vunpack.c.l.b16 %v50
  %v249 = vunpack.c.l.b16 %v51
  %v250 = vunpack.c.l.b16 %v52
  %v251 = vunpack.c.l.b16 %v53
  %v252 = vunpack.c.l.b16 %v54
  %v253 = vunpack.c.l.b16 %v55
  %v254 = vunpack.c.l.b16 %v56
  %v255 = vunpack.c.l.b16 %v57
  %v256 = vunpack.c.l.b16 %v58
  %v257 = vunpack.c.l.b16 %v59
  %v258 = vunpack.c.l.b16 %v60
  %v259 = vunpack.c.l.b16 %v61
  %v260 = vunpack.c.l.b16 %v62
  %v261 = vunpack.c.l.b16 %v63
  %v262 = vunpack.c.l.b16 %v64
  %v263 = vunpack.c.l.b16 %v65
  %v264 = vunpack.c.l.b16 %v66
  %v265 = vunpack.c.l.b16 %v67
  %v266 = vunpack.c.l.b16 %v68
  %v267 = vunpack.c.l.b16 %v69
  %v268 = vunpack.c.l.b16 %v70
  %v269 = vunpack.c.l.b16 %v71
  %v270 = vunpack.c.l.b16 %v72
  %v271 = vunpack.c.l.b16 %v73
  %v272 = vunpack.c.l.b16 %v74
  %v273 = vunpack.c.l.b16 %v75
  %v274 = vunpack.c.l.b16 %v76
  %v275 = vunpack.c.l.b16 %v77
  %v276 = vunpack.c.l.b16 %v78
  %v277 = vunpack.c.l.b16 %v79
  %v278 = vunpack.c.l.b16 %v80
  %v279 = vunpack.c.l.b16 %v81
  %v280 = vunpack.c.l.b16 %v82
  %v281 = vunpack.c.l.b16 %v83
  %v282 = vunpack.c.l.b16 %v84
  %v283 = vunpack.c.l.b16 %v85
  %v284 = vunpack.c.l.b16 %v86
  %v285 = vunpack.c.l.b16 %v87
  %v286 = vunpack.c.l.b16 %v88
  %v287 = vunpack.c.l.b16 %v89
  %v288 = vunpack.c.l.b16 %v90
  %v289 = vunpack.c.l.b16 %v91
  %v290 = vunpack.c.l.b16 %v92
  %v291 = vunpack.c.l.b16 %v93
  %v292 = vunpack.c.l.b16 %v94
  %v293 = vunpack.c.l.b16 %v95
  %v294 = vunpack.c.l.b16 %v96
  %v295 = vunpack.c.l.b16 %v97
  %v296 = vunpack.c.l.b16 %v98
  %v297 = vpack.c.b16 %v226, %v225
  %v298 = vpack.c.b16 %v228, %v227
  %v299 = vpack.c.b16 %v230, %v229
  %v300 = vpack.c.b16 %v232, %v231
  %v301 = vpack.c.b16 %v234, %v233
  %v302 = vpack.c.b16 %v236, %v235
  %v303 = vpack.c.b16 %v238, %v237
  %v304 = vpack.c.b16 %v240, %v239
  %v305 = vpack.c.b16 %v242, %v241
  %v306 = vpack.c.b16 %v244, %v243
  %v307 = vpack.c.b16 %v246, %v245
  %v308 = vpack.c.b16 %v248, %v247
  %v309 = vpack.c.b16 %v250, %v249
  %v310 = vpack.c.b16 %v252, %v251
  %v311 = vpack.c.b16 %v254, %v253
  %v312 = vpack.c.b16 %v256, %v255
  %v313 = vpack.c.b16 %v258, %v257
  %v314 = vpack.c.b16 %v260, %v259
  %v315 = vpack.c.b16 %v262, %v261
  %v316 = vpack.c.b16 %v264, %v263
  %v317 = vpack.c.b16 %v266, %v265
  %v318 = vpack.c.b16 %v268, %v267
  %v319 = vpack.c.b16 %v270, %v269
  %v320 = vpack.c.b16 %v272, %v271
  %v321 = vpack.c.b16 %v274, %v273
  %v322 = vpack.c.b16 %v276, %v275
  %v323 = vpack.c.b16 %v278, %v277
  %v324 = vpack.c.b16 %v280, %v279
  %v325 = vpack.c.b16 %v282, %v281
  %v326 = vpack.c.b16 %v284, %v283
  %v327 = vpack.c.b16 %v286, %v285
  %v328 = vpack.c.b16 %v288, %v287
  %v329 = vpack.c.b16 %v290, %v289
  %v330 = vpack.c.b16 %v292, %v291
  %v331 = vpack.c.b16 %v294, %v293
  %v332 = vpack.c.b16 %v296, %v295
  %vm369 = vcmask 523264
  %v371 = vsel %vm369, %v139, 0
  %v374 = vsel %vm369, %v144, 0
  %376 = vmatpush.bf16.msra.mxu0 %v304
  %377 = vmatpush.bf16.msra.mxu0 %v303
  %378 = vmatpush.bf16.msra.mxu0 %v302
  %379 = vmatpush.bf16.msra.mxu0 %v301
  %380 = vmatpush.bf16.msra.mxu0 %v300
  %381 = vmatpush.bf16.msra.mxu0 %v299
  %382 = vmatpush.bf16.msra.mxu0 %v298
  %383 = vmatpush.bf16.msra.mxu0 %v297
  %384 = vmatmul.bf16.gmra.mxu0 %v135
  %v385 = vpop.f32.mrf.mxu0
  %v386 = vadd.f32 %v101, %v385
  %v387 = vpop.f32.mrf.mxu0
  %v388 = vadd.f32 %v101, %v387
  %389 = vmatmul.bf16.gmra.mxu0 %v140
  %v390 = vpop.f32.mrf.mxu0
  %v391 = vadd.f32 %v101, %v390
  %v392 = vpop.f32.mrf.mxu0
  %v393 = vadd.f32 %v101, %v392
  %394 = vdwg.mxu0
  %395 = vmatpush.bf16.msra.mxu0 %v312
  %396 = vmatpush.bf16.msra.mxu0 %v311
  %397 = vmatpush.bf16.msra.mxu0 %v310
  %398 = vmatpush.bf16.msra.mxu0 %v309
  %399 = vmatpush.bf16.msra.mxu0 %v308
  %400 = vmatpush.bf16.msra.mxu0 %v307
  %401 = vmatpush.bf16.msra.mxu0 %v306
  %402 = vmatpush.bf16.msra.mxu0 %v305
  %403 = vmatmul.bf16.gmra.mxu0 %v136
  %v404 = vpop.f32.mrf.mxu0
  %v405 = vadd.f32 %v386, %v404
  %v406 = vpop.f32.mrf.mxu0
  %v407 = vadd.f32 %v388, %v406
  %408 = vmatmul.bf16.gmra.mxu0 %v141
  %v409 = vpop.f32.mrf.mxu0
  %v410 = vadd.f32 %v391, %v409
  %v411 = vpop.f32.mrf.mxu0
  %v412 = vadd.f32 %v393, %v411
  %413 = vdwg.mxu0
  %414 = vmatpush.bf16.msra.mxu0 %v320
  %415 = vmatpush.bf16.msra.mxu0 %v319
  %416 = vmatpush.bf16.msra.mxu0 %v318
  %417 = vmatpush.bf16.msra.mxu0 %v317
  %418 = vmatpush.bf16.msra.mxu0 %v316
  %419 = vmatpush.bf16.msra.mxu0 %v315
  %420 = vmatpush.bf16.msra.mxu0 %v314
  %421 = vmatpush.bf16.msra.mxu0 %v313
  %422 = vmatmul.bf16.gmra.mxu0 %v137
  %v423 = vpop.f32.mrf.mxu0
  %v424 = vadd.f32 %v405, %v423
  %v425 = vpop.f32.mrf.mxu0
  %v426 = vadd.f32 %v407, %v425
  %427 = vmatmul.bf16.gmra.mxu0 %v142
  %v428 = vpop.f32.mrf.mxu0
  %v429 = vadd.f32 %v410, %v428
  %v430 = vpop.f32.mrf.mxu0
  %v431 = vadd.f32 %v412, %v430
  %432 = vdwg.mxu0
  %433 = vmatpush.bf16.msra.mxu0 %v328
  %434 = vmatpush.bf16.msra.mxu0 %v327
  %435 = vmatpush.bf16.msra.mxu0 %v326
  %436 = vmatpush.bf16.msra.mxu0 %v325
  %437 = vmatpush.bf16.msra.mxu0 %v324
  %438 = vmatpush.bf16.msra.mxu0 %v323
  %439 = vmatpush.bf16.msra.mxu0 %v322
  %440 = vmatpush.bf16.msra.mxu0 %v321
  %441 = vmatmul.bf16.gmra.mxu0 %v138
  %v442 = vpop.f32.mrf.mxu0
  %v443 = vadd.f32 %v424, %v442
  %v444 = vpop.f32.mrf.mxu0
  %v445 = vadd.f32 %v426, %v444
  %446 = vmatmul.bf16.gmra.mxu0 %v143
  %v447 = vpop.f32.mrf.mxu0
  %v448 = vadd.f32 %v429, %v447
  %v449 = vpop.f32.mrf.mxu0
  %v450 = vadd.f32 %v431, %v449
  %451 = vdwg.mxu0
  %452 = vmatpush.bf16.msra.mxu0 0
  %453 = vmatpush.bf16.msra.mxu0 0
  %454 = vmatpush.bf16.msra.mxu0 0
  %455 = vmatpush.bf16.msra.mxu0 0
  %456 = vmatpush.bf16.msra.mxu0 %v332
  %457 = vmatpush.bf16.msra.mxu0 %v331
  %458 = vmatpush.bf16.msra.mxu0 %v330
  %459 = vmatpush.bf16.msra.mxu0 %v329
  %460 = vmatmul.bf16.gmra.mxu0 %v371
  %v461 = vpop.f32.mrf.mxu0
  %v462 = vadd.f32 %v443, %v461
  %v463 = vpop.f32.mrf.mxu0
  %v464 = vadd.f32 %v445, %v463
  %465 = vmatmul.bf16.gmra.mxu0 %v374
  %v466 = vpop.f32.mrf.mxu0
  %v467 = vadd.f32 %v448, %v466
  %v468 = vpop.f32.mrf.mxu0
  %v469 = vadd.f32 %v450, %v468
  %470 = vdwg.mxu0
  %v471 = vmax.f32 %v462, 0.0
  %v472 = vmax.f32 %v464, 0.0
  %v473 = vmax.f32 %v467, 0.0
  %v474 = vmax.f32 %v469, 0.0
  %v475 = vpack.c.bf16 %v471, %v471
  %v476 = vpack.c.bf16 %v472, %v472
  %v477 = vpack.c.bf16 %v473, %v473
  %v478 = vpack.c.bf16 %v474, %v474
  %479 = vst [vmem:[%s3] sm:$0xf] %v475
  %480 = vst [vmem:[%s3 + $0x4] sm:$0xf] %v476
  %481 = vst [vmem:[%s3 + $0x8] sm:$0xf] %v477
  %482 = vst [vmem:[%s3 + $0xc] sm:$0xf] %v478
  // Predicated region
  $region14: #{dueling_dqn_forward.6} parent=0 // pred_check
    _
  $region15: #{dueling_dqn_forward.6} parent=0 // pred_check_branch
    %484 = sbr.rel (0) target = $region17
  $region16: #{dueling_dqn_forward.6} parent=0 // pred_region
    _
  $region17: #{dueling_dqn_forward.6} parent=0 // pred_fallthru
    _
  // Predicated region
  $region18: #{dueling_dqn_forward.6} parent=0 // pred_check
    _
  $region19: #{dueling_dqn_forward.6} parent=0 // pred_check_branch
    %486 = sbr.rel (0) target = $region21
  $region20: #{dueling_dqn_forward.6} parent=0 // pred_region
    _
  $region21: #{dueling_dqn_forward.6} parent=0 // pred_fallthru
    _

// kernel: dueling_dqn_forward.7
$region0: #{dueling_dqn_forward.7}
  #allocation0 [shape = 'u32[]', space=smem, size = 0x4, offset = 0x4, fixed_abs, tag = 'smem constant byte address 0x4 - core index']
  #allocation1 [shape = 'u32[72,128]{1,0:T(1,128)}', space=vmem, size = 0x9000, scoped, tag = 'internal scratch']
  #allocation2 [shape = 'f32[2,1024]{1,0:T(2,128)}', space=vmem, size = 0x2000, scoped, tag = 'scratch operand']
  %s0 = inlined_call_operand.vmem [shape: bf16[2,64], index: 0, kind: input, shape index: {}]
  %s1 = inlined_call_operand.vmem [shape: bf16[64,1024], index: 1, kind: input, shape index: {}]
  %s2 = inlined_call_operand.vmem [shape: f32[1,1024], index: 2, kind: input, shape index: {}]
  %s3 = inlined_call_operand.vmem [shape: bf16[1024,128], index: 3, kind: input, shape index: {}]
  %s4 = inlined_call_operand.vmem [shape: f32[1,128], index: 4, kind: input, shape index: {}]
  %s5 = inlined_call_operand.hbm [shape: f32[2,128], index: 5, kind: output, shape index: {}]
  %s6 = sld [smem:[#allocation0]]
  $region38: #{dueling_dqn_forward.7} parent=0
    _
  %s8 = ssub.s32 1, %s6
  %s9 = scalar_select 0, %s8, %s6
  $region1: #{dueling_dqn_forward.7} parent=0
    #allocation3 [shape = 'u8[1024]{0}', space=vmem, size = 0x400, scoped, tag = 'output window, operand 0, single buffered']
    #allocation4 [shape = 's32[1]{0}', space=sflag, size = 0x4, scoped, tag = 'scoped memory for dueling_dqn_forward.7']
    %10 = vsyncpa [#allocation4], 0
    // Predicated region
    $region2: #{dueling_dqn_forward.7} parent=1 // pred_check
      _
    $region3: #{dueling_dqn_forward.7} parent=1 // pred_check_branch
      %12 = sbr.rel (0) target = $region5
    $region4: #{dueling_dqn_forward.7} parent=1 // pred_region
      _
    $region5: #{dueling_dqn_forward.7} parent=1 // pred_fallthru
      _
    // Predicated region
    $region6: #{dueling_dqn_forward.7} parent=1 // pred_check
      _
    $region7: #{dueling_dqn_forward.7} parent=1 // pred_check_branch
      %14 = sbr.rel (0) target = $region9
    $region8: #{dueling_dqn_forward.7} parent=1 // pred_region
      _
    $region9: #{dueling_dqn_forward.7} parent=1 // pred_fallthru
      _
    // Predicated region
    $region10: #{dueling_dqn_forward.7} parent=1 // pred_check
      _
    $region11: #{dueling_dqn_forward.7} parent=1 // pred_check_branch
      %16 = sbr.rel (0) target = $region13
    $region12: #{dueling_dqn_forward.7} parent=1 // pred_region
      _
    $region13: #{dueling_dqn_forward.7} parent=1 // pred_fallthru
      _
    // Predicated region
    $region14: #{dueling_dqn_forward.7} parent=1 // pred_check
      _
    $region15: #{dueling_dqn_forward.7} parent=1 // pred_check_branch
      %18 = sbr.rel (0) target = $region17
    $region16: #{dueling_dqn_forward.7} parent=1 // pred_region
      _
    $region17: #{dueling_dqn_forward.7} parent=1 // pred_fallthru
      _
    // Predicated region
    $region18: #{dueling_dqn_forward.7} parent=1 // pred_check
      _
    $region19: #{dueling_dqn_forward.7} parent=1 // pred_check_branch
      %20 = sbr.rel (0) target = $region21
    $region20: #{dueling_dqn_forward.7} parent=1 // pred_region
      _
    $region21: #{dueling_dqn_forward.7} parent=1 // pred_fallthru
      _
    %p22 = scmp.eq.s32.totalorder 0, 0
    // Predicated region
    $region22: #{dueling_dqn_forward.7} parent=1 // pred_check
      %p23 = pneg %p22
    $region23: #{dueling_dqn_forward.7} parent=1 // pred_check_branch
      %25 = sbr.rel (%p23) target = $region25
    $region24: #{dueling_dqn_forward.7} parent=1 // pred_region
      %26 = vst [vmem:[#allocation2] sm:$0xff] 0.0
      %27 = vst [vmem:[#allocation2 + $0x8] sm:$0xff] 0.0
    $region25: #{dueling_dqn_forward.7} parent=1 // pred_fallthru
      _
    %v28 = vld [vmem:[#allocation2] sm:$0xff]
    %v29 = vld [vmem:[#allocation2 + $0x8] sm:$0xff]
    %v30 = vld [vmem:[%s0] sm:$0x1]
    %v31 = vld [vmem:[%s1] sm:$0xff]
    %v32 = vld [vmem:[%s1 + $0x8] sm:$0xff]
    %v33 = vld [vmem:[%s1 + $0x10] sm:$0xff]
    %v34 = vld [vmem:[%s1 + $0x18] sm:$0xff]
    %v35 = vld [vmem:[%s1 + $0x20] sm:$0xff]
    %v36 = vld [vmem:[%s1 + $0x28] sm:$0xff]
    %v37 = vld [vmem:[%s1 + $0x30] sm:$0xff]
    %v38 = vld [vmem:[%s1 + $0x38] sm:$0xff]
    %v39 = vld [vmem:[%s1 + $0x40] sm:$0xff]
    %v40 = vld [vmem:[%s1 + $0x48] sm:$0xff]
    %v41 = vld [vmem:[%s1 + $0x50] sm:$0xff]
    %v42 = vld [vmem:[%s1 + $0x58] sm:$0xff]
    %v43 = vld [vmem:[%s1 + $0x60] sm:$0xff]
    %v44 = vld [vmem:[%s1 + $0x68] sm:$0xff]
    %v45 = vld [vmem:[%s1 + $0x70] sm:$0xff]
    %v46 = vld [vmem:[%s1 + $0x78] sm:$0xff]
    %v47 = vld [vmem:[%s1 + $0x80] sm:$0xff]
    %v48 = vld [vmem:[%s1 + $0x88] sm:$0xff]
    %v49 = vld [vmem:[%s1 + $0x90] sm:$0xff]
    %v50 = vld [vmem:[%s1 + $0x98] sm:$0xff]
    %v51 = vld [vmem:[%s1 + $0xa0] sm:$0xff]
    %v52 = vld [vmem:[%s1 + $0xa8] sm:$0xff]
    %v53 = vld [vmem:[%s1 + $0xb0] sm:$0xff]
    %v54 = vld [vmem:[%s1 + $0xb8] sm:$0xff]
    %v55 = vld [vmem:[%s1 + $0xc0] sm:$0xff]
    %v56 = vld [vmem:[%s1 + $0xc8] sm:$0xff]
    %v57 = vld [vmem:[%s1 + $0xd0] sm:$0xff]
    %v58 = vld [vmem:[%s1 + $0xd8] sm:$0xff]
    %v59 = vld [vmem:[%s1 + $0xe0] sm:$0xff]
    %v60 = vld [vmem:[%s1 + $0xe8] sm:$0xff]
    %v61 = vld [vmem:[%s1 + $0xf0] sm:$0xff]
    %v62 = vld [vmem:[%s1 + $0xf8] sm:$0xff]
    %v95 = vunpack.c.l.b16 %v31
    %v96 = vunpack.c.h.b16 %v31
    %v97 = vunpack.c.l.b16 %v32
    %v98 = vunpack.c.h.b16 %v32
    %v99 = vunpack.c.l.b16 %v33
    %v100 = vunpack.c.h.b16 %v33
    %v101 = vunpack.c.l.b16 %v34
    %v102 = vunpack.c.h.b16 %v34
    %v103 = vunpack.c.l.b16 %v35
    %v104 = vunpack.c.h.b16 %v35
    %v105 = vunpack.c.l.b16 %v36
    %v106 = vunpack.c.h.b16 %v36
    %v107 = vunpack.c.l.b16 %v37
    %v108 = vunpack.c.h.b16 %v37
    %v109 = vunpack.c.l.b16 %v38
    %v110 = vunpack.c.h.b16 %v38
    %v111 = vunpack.c.l.b16 %v39
    %v112 = vunpack.c.h.b16 %v39
    %v113 = vunpack.c.l.b16 %v40
    %v114 = vunpack.c.h.b16 %v40
    %v115 = vunpack.c.l.b16 %v41
    %v116 = vunpack.c.h.b16 %v41
    %v117 = vunpack.c.l.b16 %v42
    %v118 = vunpack.c.h.b16 %v42
    %v119 = vunpack.c.l.b16 %v43
    %v120 = vunpack.c.h.b16 %v43
    %v121 = vunpack.c.l.b16 %v44
    %v122 = vunpack.c.h.b16 %v44
    %v123 = vunpack.c.l.b16 %v45
    %v124 = vunpack.c.h.b16 %v45
    %v125 = vunpack.c.l.b16 %v46
    %v126 = vunpack.c.h.b16 %v46
    %v127 = vunpack.c.l.b16 %v47
    %v128 = vunpack.c.h.b16 %v47
    %v129 = vunpack.c.l.b16 %v48
    %v130 = vunpack.c.h.b16 %v48
    %v131 = vunpack.c.l.b16 %v49
    %v132 = vunpack.c.h.b16 %v49
    %v133 = vunpack.c.l.b16 %v50
    %v134 = vunpack.c.h.b16 %v50
    %v135 = vunpack.c.l.b16 %v51
    %v136 = vunpack.c.h.b16 %v51
    %v137 = vunpack.c.l.b16 %v52
    %v138 = vunpack.c.h.b16 %v52
    %v139 = vunpack.c.l.b16 %v53
    %v140 = vunpack.c.h.b16 %v53
    %v141 = vunpack.c.l.b16 %v54
    %v142 = vunpack.c.h.b16 %v54
    %v143 = vunpack.c.l.b16 %v55
    %v144 = vunpack.c.h.b16 %v55
    %v145 = vunpack.c.l.b16 %v56
    %v146 = vunpack.c.h.b16 %v56
    %v147 = vunpack.c.l.b16 %v57
    %v148 = vunpack.c.h.b16 %v57
    %v149 = vunpack.c.l.b16 %v58
    %v150 = vunpack.c.h.b16 %v58
    %v151 = vunpack.c.l.b16 %v59
    %v152 = vunpack.c.h.b16 %v59
    %v153 = vunpack.c.l.b16 %v60
    %v154 = vunpack.c.h.b16 %v60
    %v155 = vunpack.c.l.b16 %v61
    %v156 = vunpack.c.h.b16 %v61
    %v157 = vunpack.c.l.b16 %v62
    %v158 = vunpack.c.h.b16 %v62
    %v159 = vpack.c.b16 %v103, %v95
    %v160 = vpack.c.b16 %v104, %v96
    %v161 = vpack.c.b16 %v105, %v97
    %v162 = vpack.c.b16 %v106, %v98
    %v163 = vpack.c.b16 %v107, %v99
    %v164 = vpack.c.b16 %v108, %v100
    %v165 = vpack.c.b16 %v109, %v101
    %v166 = vpack.c.b16 %v110, %v102
    %v167 = vpack.c.b16 %v119, %v111
    %v168 = vpack.c.b16 %v120, %v112
    %v169 = vpack.c.b16 %v121, %v113
    %v170 = vpack.c.b16 %v122, %v114
    %v171 = vpack.c.b16 %v123, %v115
    %v172 = vpack.c.b16 %v124, %v116
    %v173 = vpack.c.b16 %v125, %v117
    %v174 = vpack.c.b16 %v126, %v118
    %v175 = vpack.c.b16 %v135, %v127
    %v176 = vpack.c.b16 %v136, %v128
    %v177 = vpack.c.b16 %v137, %v129
    %v178 = vpack.c.b16 %v138, %v130
    %v179 = vpack.c.b16 %v139, %v131
    %v180 = vpack.c.b16 %v140, %v132
    %v181 = vpack.c.b16 %v141, %v133
    %v182 = vpack.c.b16 %v142, %v134
    %v183 = vpack.c.b16 %v151, %v143
    %v184 = vpack.c.b16 %v152, %v144
    %v185 = vpack.c.b16 %v153, %v145
    %v186 = vpack.c.b16 %v154, %v146
    %v187 = vpack.c.b16 %v155, %v147
    %v188 = vpack.c.b16 %v156, %v148
    %v189 = vpack.c.b16 %v157, %v149
    %v190 = vpack.c.b16 %v158, %v150
    %vm223 = vcmask 523264
    %v225 = vsel %vm223, %v30, 0
    %227 = vmatpush.bf16.msra.mxu0 0
    %228 = vmatpush.bf16.msra.mxu0 0
    %229 = vmatpush.bf16.msra.mxu0 0
    %230 = vmatpush.bf16.msra.mxu0 0
    %231 = vmatpush.bf16.msra.mxu0 %v183
    %232 = vmatpush.bf16.msra.mxu0 %v175
    %233 = vmatpush.bf16.msra.mxu0 %v167
    %234 = vmatpush.bf16.msra.mxu0 %v159
    %235 = vmatmul.bf16.gmra.mxu0 %v225
    %v236 = vpop.f32.mrf.mxu0
    %v237 = vadd.f32 0.0, %v236
    %v238 = vpop.f32.mrf.mxu0
    %239 = vdwg.mxu0
    %240 = vmatpush.bf16.msra.mxu0 0
    %241 = vmatpush.bf16.msra.mxu0 0
    %242 = vmatpush.bf16.msra.mxu0 0
    %243 = vmatpush.bf16.msra.mxu0 0
    %244 = vmatpush.bf16.msra.mxu0 %v184
    %245 = vmatpush.bf16.msra.mxu0 %v176
    %246 = vmatpush.bf16.msra.mxu0 %v168
    %247 = vmatpush.bf16.msra.mxu0 %v160
    %248 = vmatmul.bf16.gmra.mxu0 %v225
    %v249 = vpop.f32.mrf.mxu0
    %v250 = vadd.f32 0.0, %v249
    %v251 = vpop.f32.mrf.mxu0
    %252 = vdwg.mxu0
    %253 = vmatpush.bf16.msra.mxu0 0
    %254 = vmatpush.bf16.msra.mxu0 0
    %255 = vmatpush.bf16.msra.mxu0 0
    %256 = vmatpush.bf16.msra.mxu0 0
    %257 = vmatpush.bf16.msra.mxu0 %v185
    %258 = vmatpush.bf16.msra.mxu0 %v177
    %259 = vmatpush.bf16.msra.mxu0 %v169
    %260 = vmatpush.bf16.msra.mxu0 %v161
    %261 = vmatmul.bf16.gmra.mxu0 %v225
    %v262 = vpop.f32.mrf.mxu0
    %v263 = vadd.f32 0.0, %v262
    %v264 = vpop.f32.mrf.mxu0
    %265 = vdwg.mxu0
    %266 = vmatpush.bf16.msra.mxu0 0
    %267 = vmatpush.bf16.msra.mxu0 0
    %268 = vmatpush.bf16.msra.mxu0 0
    %269 = vmatpush.bf16.msra.mxu0 0
    %270 = vmatpush.bf16.msra.mxu0 %v186
    %271 = vmatpush.bf16.msra.mxu0 %v178
    %272 = vmatpush.bf16.msra.mxu0 %v170
    %273 = vmatpush.bf16.msra.mxu0 %v162
    %274 = vmatmul.bf16.gmra.mxu0 %v225
    %v275 = vpop.f32.mrf.mxu0
    %v276 = vadd.f32 0.0, %v275
    %v277 = vpop.f32.mrf.mxu0
    %278 = vdwg.mxu0
    %279 = vmatpush.bf16.msra.mxu0 0
    %280 = vmatpush.bf16.msra.mxu0 0
    %281 = vmatpush.bf16.msra.mxu0 0
    %282 = vmatpush.bf16.msra.mxu0 0
    %283 = vmatpush.bf16.msra.mxu0 %v187
    %284 = vmatpush.bf16.msra.mxu0 %v179
    %285 = vmatpush.bf16.msra.mxu0 %v171
    %286 = vmatpush.bf16.msra.mxu0 %v163
    %287 = vmatmul.bf16.gmra.mxu0 %v225
    %v288 = vpop.f32.mrf.mxu0
    %v289 = vadd.f32 0.0, %v288
    %v290 = vpop.f32.mrf.mxu0
    %291 = vdwg.mxu0
    %292 = vmatpush.bf16.msra.mxu0 0
    %293 = vmatpush.bf16.msra.mxu0 0
    %294 = vmatpush.bf16.msra.mxu0 0
    %295 = vmatpush.bf16.msra.mxu0 0
    %296 = vmatpush.bf16.msra.mxu0 %v188
    %297 = vmatpush.bf16.msra.mxu0 %v180
    %298 = vmatpush.bf16.msra.mxu0 %v172
    %299 = vmatpush.bf16.msra.mxu0 %v164
    %300 = vmatmul.bf16.gmra.mxu0 %v225
    %v301 = vpop.f32.mrf.mxu0
    %v302 = vadd.f32 0.0, %v301
    %v303 = vpop.f32.mrf.mxu0
    %304 = vdwg.mxu0
    %305 = vmatpush.bf16.msra.mxu0 0
    %306 = vmatpush.bf16.msra.mxu0 0
    %307 = vmatpush.bf16.msra.mxu0 0
    %308 = vmatpush.bf16.msra.mxu0 0
    %309 = vmatpush.bf16.msra.mxu0 %v189
    %310 = vmatpush.bf16.msra.mxu0 %v181
    %311 = vmatpush.bf16.msra.mxu0 %v173
    %312 = vmatpush.bf16.msra.mxu0 %v165
    %313 = vmatmul.bf16.gmra.mxu0 %v225
    %v314 = vpop.f32.mrf.mxu0
    %v315 = vadd.f32 0.0, %v314
    %v316 = vpop.f32.mrf.mxu0
    %317 = vdwg.mxu0
    %318 = vmatpush.bf16.msra.mxu0 0
    %319 = vmatpush.bf16.msra.mxu0 0
    %320 = vmatpush.bf16.msra.mxu0 0
    %321 = vmatpush.bf16.msra.mxu0 0
    %322 = vmatpush.bf16.msra.mxu0 %v190
    %323 = vmatpush.bf16.msra.mxu0 %v182
    %324 = vmatpush.bf16.msra.mxu0 %v174
    %325 = vmatpush.bf16.msra.mxu0 %v166
    %326 = vmatmul.bf16.gmra.mxu0 %v225
    %v327 = vpop.f32.mrf.mxu0
    %v328 = vadd.f32 0.0, %v327
    %v329 = vpop.f32.mrf.mxu0
    %330 = vdwg.mxu0
    %v339 = vrot.slane %v250, 6
    %v340 = vrot.slane %v263, 4
    %v341 = vrot.slane %v276, 2
    %v342 = vrot.slane %v302, 6
    %v343 = vrot.slane %v315, 4
    %v344 = vrot.slane %v328, 2
    %vm345 = vcmask 1041408
    %v346 = vsel %vm345, %v237, %v339
    %vm347 = vcmask 1045508
    %v348 = vsel %vm347, %v340, %v341
    %vm349 = vcmask 1043456
    %v350 = vsel %vm349, %v346, %v348
    %v351 = vsel %vm345, %v289, %v342
    %v352 = vsel %vm347, %v343, %v344
    %v353 = vsel %vm349, %v351, %v352
    %v356 = vadd.f32 %v28, %v350
    %v357 = vadd.f32 %v29, %v353
    %358 = vst [vmem:[#allocation2] sm:$0xff] %v356
    %359 = vst [vmem:[#allocation2 + $0x8] sm:$0xff] %v357
    // Predicated region
    $region26: #{dueling_dqn_forward.7} parent=1 // pred_check
      %p360 = pneg %p22
    $region27: #{dueling_dqn_forward.7} parent=1 // pred_check_branch
      %362 = sbr.rel (%p360) target = $region29
    $region28: #{dueling_dqn_forward.7} parent=1 // pred_region
      %v363 = vld [vmem:[#allocation2] sm:$0xff]
      %v364 = vld [vmem:[#allocation2 + $0x8] sm:$0xff]
      %v365 = vld [vmem:[%s2] sm:$0xff]
      %v367 = vperm.slane %v365, 0
      %v368 = vperm.slane %v365, 1
      %v369 = vperm.slane %v365, 2
      %v370 = vperm.slane %v365, 3
      %v371 = vperm.slane %v365, 4
      %v372 = vperm.slane %v365, 5
      %v373 = vperm.slane %v365, 6
      %v374 = vperm.slane %v365, 7
      %v375 = vrot.slane %v368, 6
      %v376 = vrot.slane %v369, 4
      %v377 = vrot.slane %v370, 2
      %v378 = vrot.slane %v372, 6
      %v379 = vrot.slane %v373, 4
      %v380 = vrot.slane %v374, 2
      %v381 = vsel %vm345, %v367, %v375
      %v382 = vsel %vm347, %v376, %v377
      %v383 = vsel %vm349, %v381, %v382
      %v384 = vsel %vm345, %v371, %v378
      %v385 = vsel %vm347, %v379, %v380
      %v386 = vsel %vm349, %v384, %v385
      %v389 = vadd.f32 %v363, %v383
      %v390 = vadd.f32 %v364, %v386
      %v391 = vmax.f32 %v389, 0.0
      %v392 = vmax.f32 %v390, 0.0
      %395 = vst [vmem:[#allocation1] ss:$4 sm:$0xff] %v391
      %s396 = scalar_lea.vmem [#allocation1], 32
      %397 = vst [vmem:[%s396] ss:$4 sm:$0xff] %v392
      %v398 = vld.sshfl [vmem:[#allocation1] sm:$0xff pattern:$0x73625140]
      %v399 = vld.sshfl [vmem:[#allocation1 + $0x8] sm:$0xff pattern:$0x73625140]
      %v400 = vld.sshfl [vmem:[#allocation1 + $0x10] sm:$0xff pattern:$0x73625140]
      %v401 = vld.sshfl [vmem:[#allocation1 + $0x18] sm:$0xff pattern:$0x73625140]
      %v402 = vld.sshfl [vmem:[#allocation1 + $0x20] sm:$0xff pattern:$0x73625140]
      %v403 = vld.sshfl [vmem:[#allocation1 + $0x28] sm:$0xff pattern:$0x73625140]
      %v404 = vld.sshfl [vmem:[#allocation1 + $0x30] sm:$0xff pattern:$0x73625140]
      %v405 = vld.sshfl [vmem:[#allocation1 + $0x38] sm:$0xff pattern:$0x73625140]
      %v414 = vpack.c.bf16 %v398, %v398
      %v415 = vpack.c.bf16 %v399, %v399
      %v416 = vpack.c.bf16 %v400, %v400
      %v417 = vpack.c.bf16 %v401, %v401
      %v418 = vpack.c.bf16 %v402, %v402
      %v419 = vpack.c.bf16 %v403, %v403
      %v420 = vpack.c.bf16 %v404, %v404
      %v421 = vpack.c.bf16 %v405, %v405
      %v422 = vld [vmem:[%s3] sm:$0xf]
      %v423 = vld [vmem:[%s3 + $0x4] sm:$0xf]
      %v424 = vld [vmem:[%s3 + $0x8] sm:$0xf]
      %v425 = vld [vmem:[%s3 + $0xc] sm:$0xf]
      %v426 = vld [vmem:[%s3 + $0x10] sm:$0xf]
      %v427 = vld [vmem:[%s3 + $0x14] sm:$0xf]
      %v428 = vld [vmem:[%s3 + $0x18] sm:$0xf]
      %v429 = vld [vmem:[%s3 + $0x1c] sm:$0xf]
      %v430 = vld [vmem:[%s3 + $0x20] sm:$0xf]
      %v431 = vld [vmem:[%s3 + $0x24] sm:$0xf]
      %v432 = vld [vmem:[%s3 + $0x28] sm:$0xf]
      %v433 = vld [vmem:[%s3 + $0x2c] sm:$0xf]
      %v434 = vld [vmem:[%s3 + $0x30] sm:$0xf]
      %v435 = vld [vmem:[%s3 + $0x34] sm:$0xf]
      %v436 = vld [vmem:[%s3 + $0x38] sm:$0xf]
      %v437 = vld [vmem:[%s3 + $0x3c] sm:$0xf]
      %v438 = vld [vmem:[%s3 + $0x40] sm:$0xf]
      %v439 = vld [vmem:[%s3 + $0x44] sm:$0xf]
      %v440 = vld [vmem:[%s3 + $0x48] sm:$0xf]
      %v441 = vld [vmem:[%s3 + $0x4c] sm:$0xf]
      %v442 = vld [vmem:[%s3 + $0x50] sm:$0xf]
      %v443 = vld [vmem:[%s3 + $0x54] sm:$0xf]
      %v444 = vld [vmem:[%s3 + $0x58] sm:$0xf]
      %v445 = vld [vmem:[%s3 + $0x5c] sm:$0xf]
      %v446 = vld [vmem:[%s3 + $0x60] sm:$0xf]
      %v447 = vld [vmem:[%s3 + $0x64] sm:$0xf]
      %v448 = vld [vmem:[%s3 + $0x68] sm:$0xf]
      %v449 = vld [vmem:[%s3 + $0x6c] sm:$0xf]
      %v450 = vld [vmem:[%s3 + $0x70] sm:$0xf]
      %v451 = vld [vmem:[%s3 + $0x74] sm:$0xf]
      %v452 = vld [vmem:[%s3 + $0x78] sm:$0xf]
      %v453 = vld [vmem:[%s3 + $0x7c] sm:$0xf]
      %v454 = vld [vmem:[%s3 + $0x80] sm:$0xf]
      %v455 = vld [vmem:[%s3 + $0x84] sm:$0xf]
      %v456 = vld [vmem:[%s3 + $0x88] sm:$0xf]
      %v457 = vld [vmem:[%s3 + $0x8c] sm:$0xf]
      %v458 = vld [vmem:[%s3 + $0x90] sm:$0xf]
      %v459 = vld [vmem:[%s3 + $0x94] sm:$0xf]
      %v460 = vld [vmem:[%s3 + $0x98] sm:$0xf]
      %v461 = vld [vmem:[%s3 + $0x9c] sm:$0xf]
      %v462 = vld [vmem:[%s3 + $0xa0] sm:$0xf]
      %v463 = vld [vmem:[%s3 + $0xa4] sm:$0xf]
      %v464 = vld [vmem:[%s3 + $0xa8] sm:$0xf]
      %v465 = vld [vmem:[%s3 + $0xac] sm:$0xf]
      %v466 = vld [vmem:[%s3 + $0xb0] sm:$0xf]
      %v467 = vld [vmem:[%s3 + $0xb4] sm:$0xf]
      %v468 = vld [vmem:[%s3 + $0xb8] sm:$0xf]
      %v469 = vld [vmem:[%s3 + $0xbc] sm:$0xf]
      %v470 = vld [vmem:[%s3 + $0xc0] sm:$0xf]
      %v471 = vld [vmem:[%s3 + $0xc4] sm:$0xf]
      %v472 = vld [vmem:[%s3 + $0xc8] sm:$0xf]
      %v473 = vld [vmem:[%s3 + $0xcc] sm:$0xf]
      %v474 = vld [vmem:[%s3 + $0xd0] sm:$0xf]
      %v475 = vld [vmem:[%s3 + $0xd4] sm:$0xf]
      %v476 = vld [vmem:[%s3 + $0xd8] sm:$0xf]
      %v477 = vld [vmem:[%s3 + $0xdc] sm:$0xf]
      %v478 = vld [vmem:[%s3 + $0xe0] sm:$0xf]
      %v479 = vld [vmem:[%s3 + $0xe4] sm:$0xf]
      %v480 = vld [vmem:[%s3 + $0xe8] sm:$0xf]
      %v481 = vld [vmem:[%s3 + $0xec] sm:$0xf]
      %v482 = vld [vmem:[%s3 + $0xf0] sm:$0xf]
      %v483 = vld [vmem:[%s3 + $0xf4] sm:$0xf]
      %v484 = vld [vmem:[%s3 + $0xf8] sm:$0xf]
      %v485 = vld [vmem:[%s3 + $0xfc] sm:$0xf]
      %v486 = vld [vmem:[%s3 + $0x100] sm:$0xf]
      %v487 = vld [vmem:[%s3 + $0x104] sm:$0xf]
      %v488 = vld [vmem:[%s3 + $0x108] sm:$0xf]
      %v489 = vld [vmem:[%s3 + $0x10c] sm:$0xf]
      %v490 = vld [vmem:[%s3 + $0x110] sm:$0xf]
      %v491 = vld [vmem:[%s3 + $0x114] sm:$0xf]
      %v492 = vld [vmem:[%s3 + $0x118] sm:$0xf]
      %v493 = vld [vmem:[%s3 + $0x11c] sm:$0xf]
      %v494 = vld [vmem:[%s3 + $0x120] sm:$0xf]
      %v495 = vld [vmem:[%s3 + $0x124] sm:$0xf]
      %v496 = vld [vmem:[%s3 + $0x128] sm:$0xf]
      %v497 = vld [vmem:[%s3 + $0x12c] sm:$0xf]
      %v498 = vld [vmem:[%s3 + $0x130] sm:$0xf]
      %v499 = vld [vmem:[%s3 + $0x134] sm:$0xf]
      %v500 = vld [vmem:[%s3 + $0x138] sm:$0xf]
      %v501 = vld [vmem:[%s3 + $0x13c] sm:$0xf]
      %v502 = vld [vmem:[%s3 + $0x140] sm:$0xf]
      %v503 = vld [vmem:[%s3 + $0x144] sm:$0xf]
      %v504 = vld [vmem:[%s3 + $0x148] sm:$0xf]
      %v505 = vld [vmem:[%s3 + $0x14c] sm:$0xf]
      %v506 = vld [vmem:[%s3 + $0x150] sm:$0xf]
      %v507 = vld [vmem:[%s3 + $0x154] sm:$0xf]
      %v508 = vld [vmem:[%s3 + $0x158] sm:$0xf]
      %v509 = vld [vmem:[%s3 + $0x15c] sm:$0xf]
      %v510 = vld [vmem:[%s3 + $0x160] sm:$0xf]
      %v511 = vld [vmem:[%s3 + $0x164] sm:$0xf]
      %v512 = vld [vmem:[%s3 + $0x168] sm:$0xf]
      %v513 = vld [vmem:[%s3 + $0x16c] sm:$0xf]
      %v514 = vld [vmem:[%s3 + $0x170] sm:$0xf]
      %v515 = vld [vmem:[%s3 + $0x174] sm:$0xf]
      %v516 = vld [vmem:[%s3 + $0x178] sm:$0xf]
      %v517 = vld [vmem:[%s3 + $0x17c] sm:$0xf]
      %v518 = vld [vmem:[%s3 + $0x180] sm:$0xf]
      %v519 = vld [vmem:[%s3 + $0x184] sm:$0xf]
      %v520 = vld [vmem:[%s3 + $0x188] sm:$0xf]
      %v521 = vld [vmem:[%s3 + $0x18c] sm:$0xf]
      %v522 = vld [vmem:[%s3 + $0x190] sm:$0xf]
      %v523 = vld [vmem:[%s3 + $0x194] sm:$0xf]
      %v524 = vld [vmem:[%s3 + $0x198] sm:$0xf]
      %v525 = vld [vmem:[%s3 + $0x19c] sm:$0xf]
      %v526 = vld [vmem:[%s3 + $0x1a0] sm:$0xf]
      %v527 = vld [vmem:[%s3 + $0x1a4] sm:$0xf]
      %v528 = vld [vmem:[%s3 + $0x1a8] sm:$0xf]
      %v529 = vld [vmem:[%s3 + $0x1ac] sm:$0xf]
      %v530 = vld [vmem:[%s3 + $0x1b0] sm:$0xf]
      %v531 = vld [vmem:[%s3 + $0x1b4] sm:$0xf]
      %v532 = vld [vmem:[%s3 + $0x1b8] sm:$0xf]
      %v533 = vld [vmem:[%s3 + $0x1bc] sm:$0xf]
      %v534 = vld [vmem:[%s3 + $0x1c0] sm:$0xf]
      %v535 = vld [vmem:[%s3 + $0x1c4] sm:$0xf]
      %v536 = vld [vmem:[%s3 + $0x1c8] sm:$0xf]
      %v537 = vld [vmem:[%s3 + $0x1cc] sm:$0xf]
      %v538 = vld [vmem:[%s3 + $0x1d0] sm:$0xf]
      %v539 = vld [vmem:[%s3 + $0x1d4] sm:$0xf]
      %v540 = vld [vmem:[%s3 + $0x1d8] sm:$0xf]
      %v541 = vld [vmem:[%s3 + $0x1dc] sm:$0xf]
      %v542 = vld [vmem:[%s3 + $0x1e0] sm:$0xf]
      %v543 = vld [vmem:[%s3 + $0x1e4] sm:$0xf]
      %v544 = vld [vmem:[%s3 + $0x1e8] sm:$0xf]
      %v545 = vld [vmem:[%s3 + $0x1ec] sm:$0xf]
      %v546 = vld [vmem:[%s3 + $0x1f0] sm:$0xf]
      %v547 = vld [vmem:[%s3 + $0x1f4] sm:$0xf]
      %v548 = vld [vmem:[%s3 + $0x1f8] sm:$0xf]
      %v549 = vld [vmem:[%s3 + $0x1fc] sm:$0xf]
      %v550 = vld [vmem:[%s4] sm:$0x1]
      %v552 = vperm.slane %v550, 0
      %v682 = vunpack.c.l.b16 %v422
      %v683 = vunpack.c.l.b16 %v423
      %v684 = vunpack.c.l.b16 %v424
      %v685 = vunpack.c.l.b16 %v425
      %v686 = vunpack.c.l.b16 %v426
      %v687 = vunpack.c.l.b16 %v427
      %v688 = vunpack.c.l.b16 %v428
      %v689 = vunpack.c.l.b16 %v429
      %v690 = vunpack.c.l.b16 %v430
      %v691 = vunpack.c.l.b16 %v431
      %v692 = vunpack.c.l.b16 %v432
      %v693 = vunpack.c.l.b16 %v433
      %v694 = vunpack.c.l.b16 %v434
      %v695 = vunpack.c.l.b16 %v435
      %v696 = vunpack.c.l.b16 %v436
      %v697 = vunpack.c.l.b16 %v437
      %v698 = vunpack.c.l.b16 %v438
      %v699 = vunpack.c.l.b16 %v439
      %v700 = vunpack.c.l.b16 %v440
      %v701 = vunpack.c.l.b16 %v441
      %v702 = vunpack.c.l.b16 %v442
      %v703 = vunpack.c.l.b16 %v443
      %v704 = vunpack.c.l.b16 %v444
      %v705 = vunpack.c.l.b16 %v445
      %v706 = vunpack.c.l.b16 %v446
      %v707 = vunpack.c.l.b16 %v447
      %v708 = vunpack.c.l.b16 %v448
      %v709 = vunpack.c.l.b16 %v449
      %v710 = vunpack.c.l.b16 %v450
      %v711 = vunpack.c.l.b16 %v451
      %v712 = vunpack.c.l.b16 %v452
      %v713 = vunpack.c.l.b16 %v453
      %v714 = vunpack.c.l.b16 %v454
      %v715 = vunpack.c.l.b16 %v455
      %v716 = vunpack.c.l.b16 %v456
      %v717 = vunpack.c.l.b16 %v457
      %v718 = vunpack.c.l.b16 %v458
      %v719 = vunpack.c.l.b16 %v459
      %v720 = vunpack.c.l.b16 %v460
      %v721 = vunpack.c.l.b16 %v461
      %v722 = vunpack.c.l.b16 %v462
      %v723 = vunpack.c.l.b16 %v463
      %v724 = vunpack.c.l.b16 %v464
      %v725 = vunpack.c.l.b16 %v465
      %v726 = vunpack.c.l.b16 %v466
      %v727 = vunpack.c.l.b16 %v467
      %v728 = vunpack.c.l.b16 %v468
      %v729 = vunpack.c.l.b16 %v469
      %v730 = vunpack.c.l.b16 %v470
      %v731 = vunpack.c.l.b16 %v471
      %v732 = vunpack.c.l.b16 %v472
      %v733 = vunpack.c.l.b16 %v473
      %v734 = vunpack.c.l.b16 %v474
      %v735 = vunpack.c.l.b16 %v475
      %v736 = vunpack.c.l.b16 %v476
      %v737 = vunpack.c.l.b16 %v477
      %v738 = vunpack.c.l.b16 %v478
      %v739 = vunpack.c.l.b16 %v479
      %v740 = vunpack.c.l.b16 %v480
      %v741 = vunpack.c.l.b16 %v481
      %v742 = vunpack.c.l.b16 %v482
      %v743 = vunpack.c.l.b16 %v483
      %v744 = vunpack.c.l.b16 %v484
      %v745 = vunpack.c.l.b16 %v485
      %v746 = vunpack.c.l.b16 %v486
      %v747 = vunpack.c.l.b16 %v487
      %v748 = vunpack.c.l.b16 %v488
      %v749 = vunpack.c.l.b16 %v489
      %v750 = vunpack.c.l.b16 %v490
      %v751 = vunpack.c.l.b16 %v491
      %v752 = vunpack.c.l.b16 %v492
      %v753 = vunpack.c.l.b16 %v493
      %v754 = vunpack.c.l.b16 %v494
      %v755 = vunpack.c.l.b16 %v495
      %v756 = vunpack.c.l.b16 %v496
      %v757 = vunpack.c.l.b16 %v497
      %v758 = vunpack.c.l.b16 %v498
      %v759 = vunpack.c.l.b16 %v499
      %v760 = vunpack.c.l.b16 %v500
      %v761 = vunpack.c.l.b16 %v501
      %v762 = vunpack.c.l.b16 %v502
      %v763 = vunpack.c.l.b16 %v503
      %v764 = vunpack.c.l.b16 %v504
      %v765 = vunpack.c.l.b16 %v505
      %v766 = vunpack.c.l.b16 %v506
      %v767 = vunpack.c.l.b16 %v507
      %v768 = vunpack.c.l.b16 %v508
      %v769 = vunpack.c.l.b16 %v509
      %v770 = vunpack.c.l.b16 %v510
      %v771 = vunpack.c.l.b16 %v511
      %v772 = vunpack.c.l.b16 %v512
      %v773 = vunpack.c.l.b16 %v513
      %v774 = vunpack.c.l.b16 %v514
      %v775 = vunpack.c.l.b16 %v515
      %v776 = vunpack.c.l.b16 %v516
      %v777 = vunpack.c.l.b16 %v517
      %v778 = vunpack.c.l.b16 %v518
      %v779 = vunpack.c.l.b16 %v519
      %v780 = vunpack.c.l.b16 %v520
      %v781 = vunpack.c.l.b16 %v521
      %v782 = vunpack.c.l.b16 %v522
      %v783 = vunpack.c.l.b16 %v523
      %v784 = vunpack.c.l.b16 %v524
      %v785 = vunpack.c.l.b16 %v525
      %v786 = vunpack.c.l.b16 %v526
      %v787 = vunpack.c.l.b16 %v527
      %v788 = vunpack.c.l.b16 %v528
      %v789 = vunpack.c.l.b16 %v529
      %v790 = vunpack.c.l.b16 %v530
      %v791 = vunpack.c.l.b16 %v531
      %v792 = vunpack.c.l.b16 %v532
      %v793 = vunpack.c.l.b16 %v533
      %v794 = vunpack.c.l.b16 %v534
      %v795 = vunpack.c.l.b16 %v535
      %v796 = vunpack.c.l.b16 %v536
      %v797 = vunpack.c.l.b16 %v537
      %v798 = vunpack.c.l.b16 %v538
      %v799 = vunpack.c.l.b16 %v539
      %v800 = vunpack.c.l.b16 %v540
      %v801 = vunpack.c.l.b16 %v541
      %v802 = vunpack.c.l.b16 %v542
      %v803 = vunpack.c.l.b16 %v543
      %v804 = vunpack.c.l.b16 %v544
      %v805 = vunpack.c.l.b16 %v545
      %v806 = vunpack.c.l.b16 %v546
      %v807 = vunpack.c.l.b16 %v547
      %v808 = vunpack.c.l.b16 %v548
      %v809 = vunpack.c.l.b16 %v549
      %v810 = vpack.c.b16 %v683, %v682
      %v811 = vpack.c.b16 %v685, %v684
      %v812 = vpack.c.b16 %v687, %v686
      %v813 = vpack.c.b16 %v689, %v688
      %v814 = vpack.c.b16 %v691, %v690
      %v815 = vpack.c.b16 %v693, %v692
      %v816 = vpack.c.b16 %v695, %v694
      %v817 = vpack.c.b16 %v697, %v696
      %v818 = vpack.c.b16 %v699, %v698
      %v819 = vpack.c.b16 %v701, %v700
      %v820 = vpack.c.b16 %v703, %v702
      %v821 = vpack.c.b16 %v705, %v704
      %v822 = vpack.c.b16 %v707, %v706
      %v823 = vpack.c.b16 %v709, %v708
      %v824 = vpack.c.b16 %v711, %v710
      %v825 = vpack.c.b16 %v713, %v712
      %v826 = vpack.c.b16 %v715, %v714
      %v827 = vpack.c.b16 %v717, %v716
      %v828 = vpack.c.b16 %v719, %v718
      %v829 = vpack.c.b16 %v721, %v720
      %v830 = vpack.c.b16 %v723, %v722
      %v831 = vpack.c.b16 %v725, %v724
      %v832 = vpack.c.b16 %v727, %v726
      %v833 = vpack.c.b16 %v729, %v728
      %v834 = vpack.c.b16 %v731, %v730
      %v835 = vpack.c.b16 %v733, %v732
      %v836 = vpack.c.b16 %v735, %v734
      %v837 = vpack.c.b16 %v737, %v736
      %v838 = vpack.c.b16 %v739, %v738
      %v839 = vpack.c.b16 %v741, %v740
      %v840 = vpack.c.b16 %v743, %v742
      %v841 = vpack.c.b16 %v745, %v744
      %v842 = vpack.c.b16 %v747, %v746
      %v843 = vpack.c.b16 %v749, %v748
      %v844 = vpack.c.b16 %v751, %v750
      %v845 = vpack.c.b16 %v753, %v752
      %v846 = vpack.c.b16 %v755, %v754
      %v847 = vpack.c.b16 %v757, %v756
      %v848 = vpack.c.b16 %v759, %v758
      %v849 = vpack.c.b16 %v761, %v760
      %v850 = vpack.c.b16 %v763, %v762
      %v851 = vpack.c.b16 %v765, %v764
      %v852 = vpack.c.b16 %v767, %v766
      %v853 = vpack.c.b16 %v769, %v768
      %v854 = vpack.c.b16 %v771, %v770
      %v855 = vpack.c.b16 %v773, %v772
      %v856 = vpack.c.b16 %v775, %v774
      %v857 = vpack.c.b16 %v777, %v776
      %v858 = vpack.c.b16 %v779, %v778
      %v859 = vpack.c.b16 %v781, %v780
      %v860 = vpack.c.b16 %v783, %v782
      %v861 = vpack.c.b16 %v785, %v784
      %v862 = vpack.c.b16 %v787, %v786
      %v863 = vpack.c.b16 %v789, %v788
      %v864 = vpack.c.b16 %v791, %v790
      %v865 = vpack.c.b16 %v793, %v792
      %v866 = vpack.c.b16 %v795, %v794
      %v867 = vpack.c.b16 %v797, %v796
      %v868 = vpack.c.b16 %v799, %v798
      %v869 = vpack.c.b16 %v801, %v800
      %v870 = vpack.c.b16 %v803, %v802
      %v871 = vpack.c.b16 %v805, %v804
      %v872 = vpack.c.b16 %v807, %v806
      %v873 = vpack.c.b16 %v809, %v808
      %938 = vmatpush.bf16.msra.mxu0 %v817
      %939 = vmatpush.bf16.msra.mxu0 %v816
      %940 = vmatpush.bf16.msra.mxu0 %v815
      %941 = vmatpush.bf16.msra.mxu0 %v814
      %942 = vmatpush.bf16.msra.mxu0 %v813
      %943 = vmatpush.bf16.msra.mxu0 %v812
      %944 = vmatpush.bf16.msra.mxu0 %v811
      %945 = vmatpush.bf16.msra.mxu0 %v810
      %946 = vmatmul.bf16.gmra.mxu0 %v414
      %v947 = vpop.f32.mrf.mxu0
      %v948 = vadd.f32 %v552, %v947
      %v949 = vpop.f32.mrf.mxu0
      %950 = vdwg.mxu0
      %951 = vmatpush.bf16.msra.mxu0 %v825
      %952 = vmatpush.bf16.msra.mxu0 %v824
      %953 = vmatpush.bf16.msra.mxu0 %v823
      %954 = vmatpush.bf16.msra.mxu0 %v822
      %955 = vmatpush.bf16.msra.mxu0 %v821
      %956 = vmatpush.bf16.msra.mxu0 %v820
      %957 = vmatpush.bf16.msra.mxu0 %v819
      %958 = vmatpush.bf16.msra.mxu0 %v818
      %959 = vmatmul.bf16.gmra.mxu0 %v415
      %v960 = vpop.f32.mrf.mxu0
      %v961 = vadd.f32 %v948, %v960
      %v962 = vpop.f32.mrf.mxu0
      %963 = vdwg.mxu0
      %964 = vmatpush.bf16.msra.mxu0 %v833
      %965 = vmatpush.bf16.msra.mxu0 %v832
      %966 = vmatpush.bf16.msra.mxu0 %v831
      %967 = vmatpush.bf16.msra.mxu0 %v830
      %968 = vmatpush.bf16.msra.mxu0 %v829
      %969 = vmatpush.bf16.msra.mxu0 %v828
      %970 = vmatpush.bf16.msra.mxu0 %v827
      %971 = vmatpush.bf16.msra.mxu0 %v826
      %972 = vmatmul.bf16.gmra.mxu0 %v416
      %v973 = vpop.f32.mrf.mxu0
      %v974 = vadd.f32 %v961, %v973
      %v975 = vpop.f32.mrf.mxu0
      %976 = vdwg.mxu0
      %977 = vmatpush.bf16.msra.mxu0 %v841
      %978 = vmatpush.bf16.msra.mxu0 %v840
      %979 = vmatpush.bf16.msra.mxu0 %v839
      %980 = vmatpush.bf16.msra.mxu0 %v838
      %981 = vmatpush.bf16.msra.mxu0 %v837
      %982 = vmatpush.bf16.msra.mxu0 %v836
      %983 = vmatpush.bf16.msra.mxu0 %v835
      %984 = vmatpush.bf16.msra.mxu0 %v834
      %985 = vmatmul.bf16.gmra.mxu0 %v417
      %v986 = vpop.f32.mrf.mxu0
      %v987 = vadd.f32 %v974, %v986
      %v988 = vpop.f32.mrf.mxu0
      %989 = vdwg.mxu0
      %990 = vmatpush.bf16.msra.mxu0 %v849
      %991 = vmatpush.bf16.msra.mxu0 %v848
      %992 = vmatpush.bf16.msra.mxu0 %v847
      %993 = vmatpush.bf16.msra.mxu0 %v846
      %994 = vmatpush.bf16.msra.mxu0 %v845
      %995 = vmatpush.bf16.msra.mxu0 %v844
      %996 = vmatpush.bf16.msra.mxu0 %v843
      %997 = vmatpush.bf16.msra.mxu0 %v842
      %998 = vmatmul.bf16.gmra.mxu0 %v418
      %v999 = vpop.f32.mrf.mxu0
      %v1000 = vadd.f32 %v987, %v999
      %v1001 = vpop.f32.mrf.mxu0
      %1002 = vdwg.mxu0
      %1003 = vmatpush.bf16.msra.mxu0 %v857
      %1004 = vmatpush.bf16.msra.mxu0 %v856
      %1005 = vmatpush.bf16.msra.mxu0 %v855
      %1006 = vmatpush.bf16.msra.mxu0 %v854
      %1007 = vmatpush.bf16.msra.mxu0 %v853
      %1008 = vmatpush.bf16.msra.mxu0 %v852
      %1009 = vmatpush.bf16.msra.mxu0 %v851
      %1010 = vmatpush.bf16.msra.mxu0 %v850
      %1011 = vmatmul.bf16.gmra.mxu0 %v419
      %v1012 = vpop.f32.mrf.mxu0
      %v1013 = vadd.f32 %v1000, %v1012
      %v1014 = vpop.f32.mrf.mxu0
      %1015 = vdwg.mxu0
      %1016 = vmatpush.bf16.msra.mxu0 %v865
      %1017 = vmatpush.bf16.msra.mxu0 %v864
      %1018 = vmatpush.bf16.msra.mxu0 %v863
      %1019 = vmatpush.bf16.msra.mxu0 %v862
      %1020 = vmatpush.bf16.msra.mxu0 %v861
      %1021 = vmatpush.bf16.msra.mxu0 %v860
      %1022 = vmatpush.bf16.msra.mxu0 %v859
      %1023 = vmatpush.bf16.msra.mxu0 %v858
      %1024 = vmatmul.bf16.gmra.mxu0 %v420
      %v1025 = vpop.f32.mrf.mxu0
      %v1026 = vadd.f32 %v1013, %v1025
      %v1027 = vpop.f32.mrf.mxu0
      %1028 = vdwg.mxu0
      %1029 = vmatpush.bf16.msra.mxu0 %v873
      %1030 = vmatpush.bf16.msra.mxu0 %v872
      %1031 = vmatpush.bf16.msra.mxu0 %v871
      %1032 = vmatpush.bf16.msra.mxu0 %v870
      %1033 = vmatpush.bf16.msra.mxu0 %v869
      %1034 = vmatpush.bf16.msra.mxu0 %v868
      %1035 = vmatpush.bf16.msra.mxu0 %v867
      %1036 = vmatpush.bf16.msra.mxu0 %v866
      %1037 = vmatmul.bf16.gmra.mxu0 %v421
      %v1038 = vpop.f32.mrf.mxu0
      %v1039 = vadd.f32 %v1026, %v1038
      %v1040 = vpop.f32.mrf.mxu0
      %1041 = vdwg.mxu0
      %1043 = vset.pattern.permute.xlu0 6
      %1044 = vperm.xlu0 %1043, %v1039
      %v1045 = vpop.permute.xlu0 %1044
      %v1047 = vadd.f32 %v1045, %v1039
      %vm1048 = vcmask 41984
      %v1049 = vsel %vm1048, %v1039, 0.0
      %1050 = vadd.xlane.f32.xlu0 %v1049
      %v1051 = vpop.xlane.xlu0 %1050
      %v1052 = vrot.slane %v1051, 4
      %v1053 = vadd.f32 %v1051, %v1052
      %v1054 = vrot.slane %v1053, 2
      %v1055 = vadd.f32 %v1053, %v1054
      %v1056 = vrot.slane %v1055, 1
      %v1057 = vadd.f32 %v1055, %v1056
      %s1058 = vtos %v1057
      %v1059 = vrcp.pop 12.0
      %v1060 = vmul.f32 12.0, %v1059
      %v1061 = vsub.f32 1.0, %v1060
      %v1062 = vmul.f32 %v1059, %v1061
      %v1063 = vadd.f32 %v1059, %v1062
      %vm1064 = vweird.f32 %v1059
      %v1065 = vsel %vm1064, %v1059, %v1063
      %s1066 = vtos %v1065
      %s1067 = smul.f32 %s1058, %s1066
      %v1068 = vstv %s1067
      %v1069 = vsub.f32 %v1047, %v1068
      %1070 = vst [vmem:[#allocation3] sm:$0x3] %v1069
    $region29: #{dueling_dqn_forward.7} parent=1 // pred_fallthru
      _
    // Predicated region
    $region30: #{dueling_dqn_forward.7} parent=1 // pred_check
      _
    $region31: #{dueling_dqn_forward.7} parent=1 // pred_check_branch
      %1072 = sbr.rel (0) target = $region33
    $region32: #{dueling_dqn_forward.7} parent=1 // pred_region
      %1074 = vsyncadd [#allocation4], 0
      %s1076 = sshll.u32 [#allocation3], 4
      %s1077 = int_to_ptr.vmem [resolvable:$true] %s1076
      %s1078 = sshll.u32 %s5, 4
      %s1079 = int_to_ptr.hbm [resolvable:$true] %s1078
      %1081 = dma.vmem_to_hbm [thread:$0]  %s1077, 32, %s1079, [#allocation4]
    $region33: #{dueling_dqn_forward.7} parent=1 // pred_fallthru
      _
    // Predicated region
    $region34: #{dueling_dqn_forward.7} parent=1 // pred_check
      _
    $region35: #{dueling_dqn_forward.7} parent=1 // pred_check_branch
      %1083 = sbr.rel (0) target = $region37
    $region36: #{dueling_dqn_forward.7} parent=1 // pred_region
      %1085 = dma.done [#allocation4], 32
    $region37: #{dueling_dqn_forward.7} parent=1 // pred_fallthru
      _
    %1086 = vsyncpa [#allocation4], 1

</llo_original>
